<compile_context>
chip_gen: v7x
topology: tpu7x:2x2x1
jax: 0.10.0
libtpu: 0.0.40
codegen_flags: <defaults>
</compile_context>

<pallas_src>
import functools
import math

import jax
import jax.numpy as jnp
from jax.experimental import pallas as pl
from jax.experimental.pallas import tpu as pltpu

LANE = 128


def _round_up(x, m):
    return pl.cdiv(x, m) * m


def _pad_cols_to(n, enable):
    return _round_up(n, LANE) if (enable and n % LANE) else n


def _zpad_cols(a, n):
    return a if a.shape[1] == n else jnp.pad(a, ((0, 0), (0, n - a.shape[1])))


def _zpad_rows(a, n):
    return a if a.shape[0] == n else jnp.pad(a, ((0, n - a.shape[0]), (0, 0)))


def _tpu_kind():
    try:
        return jax.devices()[0].device_kind.lower()
    except Exception:
        return ""


# ----------------------------------------------------------------------------
# Pallas kernel: fused DCGLC "head"
#   inputs : pooled graph embedding y (TB, E) tile (bf16) + resident weights
#   output : packed lane-dense tile [ g | z | q | s | 0-pad ]  (TB, P) f32
# ----------------------------------------------------------------------------
def _dcglc_head_kernel(alpha, eta, d, E, H2, C, K, Eg, H2g, Kg, act_dtype,
                       y_ref,
                       wp1, bp1, wp2, bp2,              # proj_head[n_aug]
                       wg1s, bg1s, wg2, bg2, wg3, bg3,  # global_d FF (L1 fused + shortcut)
                       wc1s, bc1s, wc2, bc2,            # cluster_embedding (L1 fused + shortcut)
                       mud_ref,                         # [mu^T | pad | D]   (C, Kg+C) bf16
                       musq_ref,                        # sum(mu^2) per cluster (1, K) f32
                       ind_ref,                         # subspace indicator (C, K) bf16
                       out_ref):
    f32 = jnp.float32

    def lrelu(v):            # nn.LeakyReLU default negative_slope = 0.01
        return jnp.where(v > 0, v, 0.01 * v)

    def relu(v):
        return jnp.maximum(v, 0.0)

    def lin(v, w_ref, b_ref):
        w = w_ref[...]       # bf16 weights; f32 accumulation on the MXU
        r = jnp.dot(v.astype(w.dtype), w, preferred_element_type=f32) + b_ref[...]
        return r.astype(act_dtype)

    y = y_ref[...]           # bf16 streamed tile

    # ---- proj_head[n_aug]: Linear -> LeakyReLU -> Linear ----
    h = lrelu(lin(y, wp1, bp1))
    yproj = lin(h, wp2, bp2)

    # ---- global_d = FF(E): 3x(Linear+ReLU) + Linear shortcut (L1 fused) ----
    t = lin(yproj, wg1s, bg1s)          # (TB, Eg + E) = [layer-1 | zero-pad | shortcut]
    gb = relu(t[:, :Eg])                # lane-aligned slab; pad cols stay 0
    g_sc = t[:, Eg:]                    # shortcut slice starts on a 128-lane boundary
    gb = relu(lin(gb, wg2, bg2))        # wg2 has zero rows for the pad columns
    gb = relu(lin(gb, wg3, bg3))
    g = gb + g_sc                       # (TB, E)

    # ---- cluster_embedding = Cluster(E, C) (L1 fused with shortcut) ----
    u = lin(g, wc1s, bc1s)              # (TB, H2g + C) = [layer-1 | zero-pad | shortcut]
    c1 = lrelu(u[:, :H2g])
    z_sc = u[:, H2g:]
    c2 = lrelu(lin(c1, wc2, bc2))       # wc2 has zero rows for the pad columns
    z = c2 + z_sc                       # (TB, C)

    # ---- q: Student-t soft assignment; z @ [mu^T | pad | D] fused in one matmul ----
    mud = mud_ref[...]
    zm = jnp.dot(z.astype(mud.dtype), mud, preferred_element_type=f32)   # (TB, Kg + C)
    cross = zm[:, :K]
    zd = zm[:, Kg:]
    zf = z.astype(f32)
    z_sq = jnp.sum(zf * zf, axis=1, keepdims=True)                        # (TB, 1)
    # TODO(synk): expanded ||z||^2 - 2 z.mu + ||mu||^2 with a clamp masks (rather
    # than avoids) cancellation for points extremely close to a centroid.
    dist2 = jnp.maximum(z_sq - 2.0 * cross + musq_ref[...], 0.0)
    q = 1.0 / (1.0 + dist2 * (1.0 / alpha))                               # exact divide
    power = (alpha + 1.0) / 2.0
    if abs(power - 1.0) > 1e-12:        # trace-time: pow is identity when alpha == 1
        q = jnp.exp(power * jnp.log(q))
    q = q / jnp.sum(q, axis=1, keepdims=True)                             # exact normalize

    # ---- s: subspace affinity. For cluster i: sum((z @ D[:, i*d:(i+1)*d])^2) ----
    zd2 = zd * zd
    ind = ind_ref[...]
    s = jnp.dot(zd2.astype(ind.dtype), ind, preferred_element_type=f32)   # (TB, K)
    s = (s + eta * d) * (1.0 / ((eta + 1.0) * d))
    s = s / jnp.sum(s, axis=1, keepdims=True)                             # exact normalize

    # ---- lane-dense packed store: [ g | z | q | s | zero-pad ] ----
    tb = y.shape[0]
    pad = out_ref.shape[1] - (E + C + 2 * K)
    parts = [g.astype(f32), zf, q, s]
    if pad > 0:
        parts.append(jnp.zeros((tb, pad), f32))
    out_ref[...] = jnp.concatenate(parts, axis=1)


def dcglc_head(y, params, alpha, eta, d):
    B, E = y.shape
    C = params["D"].shape[0]
    K = params["mu_t"].shape[1]
    H2 = params["wc2"].shape[0]

    kind = _tpu_kind()
    is_v5e = ("v5 lite" in kind) or ("v5e" in kind) or ("v5lite" in kind)
    is_v7 = ("v7" in kind) or ("tpu7" in kind)
    lane_pad = not is_v5e                      # 128-lane aligned splits (v6e/v7x only)
    act_dtype = jnp.float32 if is_v5e else jnp.bfloat16

    bf16 = jnp.bfloat16
    f32 = jnp.float32

    # ---- batch tiling: bf16 16-row grain, tile cap 512, >=2 grid steps when possible
    grain = 16
    Bp0 = _round_up(max(B, 1), grain)
    TB = max(grain, min(512, _round_up(pl.cdiv(Bp0, 2), grain)))
    Bp = _round_up(Bp0, TB)
    nb = Bp // TB

    y = y.astype(bf16)                          # streamed input in bf16 (half DMA)
    if Bp != B:
        y = jnp.pad(y, ((0, Bp - B), (0, 0)))

    # ---- packed lane-dense output width (multiple of 128 lanes)
    P = _round_up(E + C + 2 * K, 128)

    # ---- 128-lane aligned fused splits (no-op when dims already aligned / v5e)
    Eg = _pad_cols_to(E, lane_pad)
    H2g = _pad_cols_to(H2, lane_pad)
    Kg = _pad_cols_to(K, lane_pad)

    wp1 = params["wp1"].astype(bf16)
    wp2 = params["wp2"].astype(bf16)
    wg1s = jnp.concatenate([_zpad_cols(params["wg1"], Eg), params["wgs"]], axis=1).astype(bf16)
    bg1s = jnp.concatenate([_zpad_cols(params["bg1"], Eg), params["bgs"]], axis=1).astype(f32)
    wg2 = _zpad_rows(params["wg2"], Eg).astype(bf16)
    wg3 = params["wg3"].astype(bf16)
    wc1s = jnp.concatenate([_zpad_cols(params["wc1"], H2g), params["wcs"]], axis=1).astype(bf16)
    bc1s = jnp.concatenate([_zpad_cols(params["bc1"], H2g), params["bcs"]], axis=1).astype(f32)
    wc2 = _zpad_rows(params["wc2"], H2g).astype(bf16)

    mu_b = params["mu_t"].astype(bf16)                                    # (C, K)
    mud = jnp.concatenate([_zpad_cols(mu_b, Kg), params["D"].astype(bf16)], axis=1)  # (C, Kg+C)
    # musq from the bf16-rounded mu so it matches the bf16 cross term in dist2
    musq = jnp.sum(mu_b.astype(f32) ** 2, axis=0, keepdims=True)          # (1, K)
    G = params["G"].astype(bf16)                                          # 0/1 -> exact in bf16

    ins = [y,
           wp1, params["bp1"], wp2, params["bp2"],
           wg1s, bg1s, wg2, params["bg2"], wg3, params["bg3"],
           wc1s, bc1s, wc2, params["bc2"],
           mud, musq, G]

    # ---- VMEM budget: resident weights (+fallback double-buffer) + y/out tiles,
    #      headroom, cap 48 MiB on v7x (64 MiB physical) else 100 MiB (128 MiB).
    w_bytes = sum(int(a.size) * a.dtype.itemsize for a in ins[1:])
    tile_bytes = 2 * (TB * E * 2 + TB * P * 4)
    cap = (48 if is_v7 else 100) * 1024 * 1024
    vmem_limit = int(min(cap, max(32 * 1024 * 1024,
                                  2 * w_bytes + tile_bytes + (8 << 20))))

    flops_per_row = 2 * (E * E + E * E
                         + E * (Eg + E) + Eg * E + E * E
                         + E * (H2g + C) + H2g * C
                         + C * (Kg + C) + C * K)
    cost = pl.CostEstimate(flops=int(Bp * flops_per_row),
                           transcendentals=int(Bp * (2 * K + 2)),
                           bytes_accessed=int(Bp * E * 2 + Bp * P * 4 + w_bytes))

    kernel = functools.partial(_dcglc_head_kernel,
                               float(alpha), float(eta), int(d),
                               E, H2, C, K, Eg, H2g, Kg, act_dtype)

    def run(single_buffer_weights):
        def resident(a):  # weight stays in VMEM across all grid steps
            nd = a.ndim
            kw = dict(pipeline_mode=pl.Buffered(1)) if single_buffer_weights else {}
            return pl.BlockSpec(a.shape, lambda i, _nd=nd: (0,) * _nd, **kw)

        in_specs = [pl.BlockSpec((TB, E), lambda i: (i, 0))] + [resident(a) for a in ins[1:]]
        out_spec = pl.BlockSpec((TB, P), lambda i: (i, 0))
        return pl.pallas_call(
            kernel,
            out_shape=jax.ShapeDtypeStruct((Bp, P), jnp.float32),
            grid=(nb,),
            in_specs=in_specs,
            out_specs=out_spec,
            compiler_params=pltpu.CompilerParams(
                dimension_semantics=("parallel",),
                vmem_limit_bytes=vmem_limit),
            cost_estimate=cost,
        )(*ins)

    try:
        packed = run(True)            # single-buffer the constant resident weights
    except Exception:
        packed = run(False)           # fallback: default double-buffering

    g = packed[:B, :E]
    z = packed[:B, E:E + C]
    q = packed[:B, E + C:E + C + K]
    s = packed[:B, E + C + K:E + C + 2 * K]
    return z, q, s, g


# ----------------------------------------------------------------------------
# GNN encoder surrogate (plain JAX glue).
# TODO(synk): the original `Encoder` GNN class (GINConv + BatchNorm1d) is not
# provided in the reference source; this is an InfoGraph-style GIN stand-in,
# and the edge scatter (segment_sum) has no clean Pallas equivalent.
# ----------------------------------------------------------------------------
def gin_encoder(x, edge_index, batch, num_graphs, layers):
    src, dst = edge_index[0], edge_index[1]
    h = x
    xs = []
    for (w1, b1, w2, b2) in layers:
        msgs = jax.ops.segment_sum(h[src], dst, num_segments=h.shape[0])
        agg = h + msgs                                  # GIN aggregation (eps = 0)
        h = jax.nn.relu(agg @ w1 + b1)
        h = jax.nn.relu(h @ w2 + b2)
        xs.append(h)
    pooled = [jax.ops.segment_sum(hh, batch, num_segments=num_graphs) for hh in xs]
    y = jnp.concatenate(pooled, axis=1)                 # (num_graphs, hidden*num_layers)
    M = jnp.concatenate(xs, axis=1)                     # (num_nodes,  hidden*num_layers)
    return y, M


def dcglc_forward(x, edge_index, batch, num_graphs, params, alpha, eta, d):
    y, M = gin_encoder(x, edge_index, batch, num_graphs, params["gin_layers"])
    # Note: the PyTorch model also computes l_enc = local_d(M) but discards it,
    # so it is omitted here (no effect on outputs).
    z, q, s, g = dcglc_head(y, params, alpha, eta, d)
    return z, q, s, g


# ----------------------------------------------------------------------------
# Deterministic parameter init (xavier_uniform weights, zero biases, matching
# encoder.init_emb; cluster_layer / D are uninitialized torch.Tensor params in
# the reference, so they get a deterministic random-normal init here).
# ----------------------------------------------------------------------------
def init_params(key, num_features, hidden, num_layers, K, d):
    E = hidden * num_layers
    C = K * d
    H2 = E // 2
    keys = iter(jax.random.split(key, 64))

    def xav(fi, fo):
        bound = math.sqrt(6.0 / (fi + fo))
        return jax.random.uniform(next(keys), (fi, fo), jnp.float32, -bound, bound)

    def zb(n):
        return jnp.zeros((1, n), jnp.float32)

    gin_layers = []
    in_dim = num_features
    for _ in range(num_layers):
        gin_layers.append((xav(in_dim, hidden), jnp.zeros((hidden,), jnp.float32),
                           xav(hidden, hidden), jnp.zeros((hidden,), jnp.float32)))
        in_dim = hidden

    params = dict(
        gin_layers=gin_layers,
        wp1=xav(E, E), bp1=zb(E), wp2=xav(E, E), bp2=zb(E),
        wg1=xav(E, E), bg1=zb(E), wg2=xav(E, E), bg2=zb(E),
        wg3=xav(E, E), bg3=zb(E), wgs=xav(E, E), bgs=zb(E),
        wc1=xav(E, H2), bc1=zb(H2), wc2=xav(H2, C), bc2=zb(C),
        wcs=xav(E, C), bcs=zb(C),
    )
    mu = 0.1 * jax.random.normal(next(keys), (K, C), jnp.float32)   # cluster_layer
    D = 0.1 * jax.random.normal(next(keys), (C, C), jnp.float32)    # self.D
    params["mu_t"] = mu.T                                           # (C, K)
    params["D"] = D
    # G[j, i] = 1 iff column j of z@D falls in subspace block i (width d)
    params["G"] = (jnp.arange(C)[:, None] // d == jnp.arange(K)[None, :]).astype(jnp.float32)
    return params


if __name__ == "__main__":
    key = jax.random.PRNGKey(0)

    # small, self-consistent shapes
    num_nodes, num_features = 16, 8
    num_graphs = 4
    hidden_dim, num_gc_layers = 16, 2          # embedding_dim E = 32
    n_label, d = 3, 4                          # cluster_emb C = 12
    alpha, eta = 1.0, 1.0

    k_x, k_p = jax.random.split(key)
    x = jax.random.normal(k_x, (num_nodes, num_features), jnp.float32)

    # ring edges inside each graph (4 nodes per graph), both directions
    nodes_per_graph = num_nodes // num_graphs
    src, dst = [], []
    for gi in range(num_graphs):
        base = gi * nodes_per_graph
        for i in range(nodes_per_graph):
            a = base + i
            b = base + (i + 1) % nodes_per_graph
            src += [a, b]
            dst += [b, a]
    edge_index = jnp.array([src, dst], dtype=jnp.int32)
    batch = jnp.repeat(jnp.arange(num_graphs, dtype=jnp.int32), nodes_per_graph)

    params = init_params(k_p, num_features, hidden_dim, num_gc_layers, n_label, d)

    z, q, s, y = dcglc_forward(x, edge_index, batch, num_graphs, params, alpha, eta, d)
    jax.block_until_ready((z, q, s, y))

    assert z.shape == (num_graphs, n_label * d)
    assert q.shape == (num_graphs, n_label)
    assert s.shape == (num_graphs, n_label)
    assert y.shape == (num_graphs, hidden_dim * num_gc_layers)
    assert bool(jnp.all(jnp.isfinite(z))) and bool(jnp.all(jnp.isfinite(y)))
    # exact-division normalization -> rows sum to 1 to fp precision
    assert bool(jnp.all(jnp.abs(jnp.sum(q, axis=1) - 1.0) < 1e-3))
    assert bool(jnp.all(jnp.abs(jnp.sum(s, axis=1) - 1.0) < 1e-3))
    print("KERNEL_OK")
</pallas_src>

<mosaic_0001>
module attributes {stable_mosaic.version = 11 : i64} {
  func.func @_dcglc_head_kernel(%arg0: i32, %arg1: memref<16x32xbf16, #tpu.memory_space<vmem>>, %arg2: memref<32x32xbf16, #tpu.memory_space<vmem>>, %arg3: memref<1x32xf32, #tpu.memory_space<vmem>>, %arg4: memref<32x32xbf16, #tpu.memory_space<vmem>>, %arg5: memref<1x32xf32, #tpu.memory_space<vmem>>, %arg6: memref<32x160xbf16, #tpu.memory_space<vmem>>, %arg7: memref<1x160xf32, #tpu.memory_space<vmem>>, %arg8: memref<128x32xbf16, #tpu.memory_space<vmem>>, %arg9: memref<1x32xf32, #tpu.memory_space<vmem>>, %arg10: memref<32x32xbf16, #tpu.memory_space<vmem>>, %arg11: memref<1x32xf32, #tpu.memory_space<vmem>>, %arg12: memref<32x140xbf16, #tpu.memory_space<vmem>>, %arg13: memref<1x140xf32, #tpu.memory_space<vmem>>, %arg14: memref<128x12xbf16, #tpu.memory_space<vmem>>, %arg15: memref<1x12xf32, #tpu.memory_space<vmem>>, %arg16: memref<12x140xbf16, #tpu.memory_space<vmem>>, %arg17: memref<1x3xf32, #tpu.memory_space<vmem>>, %arg18: memref<12x3xbf16, #tpu.memory_space<vmem>>, %arg19: memref<16x128xf32, #tpu.memory_space<vmem>>) attributes {dimension_semantics = [#tpu.dimension_semantics<parallel>], iteration_bounds = array<i64: 1>, scalar_prefetch = 0 : i64, scratch_operands = 0 : i64, tpu.core_type = #tpu.core_type<tc>, window_params = [{transform_indices = @transform_0, window_bounds = array<i64: 16, 32>}, {pipeline_mode = #tpu.pipeline_mode<synchronous>, transform_indices = @transform_1, window_bounds = array<i64: 32, 32>}, {pipeline_mode = #tpu.pipeline_mode<synchronous>, transform_indices = @transform_2, window_bounds = array<i64: 1, 32>}, {pipeline_mode = #tpu.pipeline_mode<synchronous>, transform_indices = @transform_3, window_bounds = array<i64: 32, 32>}, {pipeline_mode = #tpu.pipeline_mode<synchronous>, transform_indices = @transform_4, window_bounds = array<i64: 1, 32>}, {pipeline_mode = #tpu.pipeline_mode<synchronous>, transform_indices = @transform_5, window_bounds = array<i64: 32, 160>}, {pipeline_mode = #tpu.pipeline_mode<synchronous>, transform_indices = @transform_6, window_bounds = array<i64: 1, 160>}, {pipeline_mode = #tpu.pipeline_mode<synchronous>, transform_indices = @transform_7, window_bounds = array<i64: 128, 32>}, {pipeline_mode = #tpu.pipeline_mode<synchronous>, transform_indices = @transform_8, window_bounds = array<i64: 1, 32>}, {pipeline_mode = #tpu.pipeline_mode<synchronous>, transform_indices = @transform_9, window_bounds = array<i64: 32, 32>}, {pipeline_mode = #tpu.pipeline_mode<synchronous>, transform_indices = @transform_10, window_bounds = array<i64: 1, 32>}, {pipeline_mode = #tpu.pipeline_mode<synchronous>, transform_indices = @transform_11, window_bounds = array<i64: 32, 140>}, {pipeline_mode = #tpu.pipeline_mode<synchronous>, transform_indices = @transform_12, window_bounds = array<i64: 1, 140>}, {pipeline_mode = #tpu.pipeline_mode<synchronous>, transform_indices = @transform_13, window_bounds = array<i64: 128, 12>}, {pipeline_mode = #tpu.pipeline_mode<synchronous>, transform_indices = @transform_14, window_bounds = array<i64: 1, 12>}, {pipeline_mode = #tpu.pipeline_mode<synchronous>, transform_indices = @transform_15, window_bounds = array<i64: 12, 140>}, {pipeline_mode = #tpu.pipeline_mode<synchronous>, transform_indices = @transform_16, window_bounds = array<i64: 1, 3>}, {pipeline_mode = #tpu.pipeline_mode<synchronous>, transform_indices = @transform_17, window_bounds = array<i64: 12, 3>}, {transform_indices = @transform_18, window_bounds = array<i64: 16, 128>}]} {
    %c0 = arith.constant 0 : index
    %c0_0 = arith.constant 0 : index
    %0 = vector.load %arg1[%c0, %c0_0] : memref<16x32xbf16, #tpu.memory_space<vmem>>, vector<16x32xbf16>
    %c0_1 = arith.constant 0 : index
    %c0_2 = arith.constant 0 : index
    %1 = vector.load %arg2[%c0_1, %c0_2] : memref<32x32xbf16, #tpu.memory_space<vmem>>, vector<32x32xbf16>
    %cst = arith.constant dense<0.000000e+00> : vector<16x32xf32>
    %2 = tpu.matmul %0, %1, %cst {dimension_numbers = #tpu.dot_dimension_numbers<[1], [0], [0], [1], [0, 0, 1, 1], [], []>} : vector<16x32xbf16>, vector<32x32xbf16>, vector<16x32xf32> -> vector<16x32xf32>
    %c0_3 = arith.constant 0 : index
    %c0_4 = arith.constant 0 : index
    %3 = vector.load %arg3[%c0_3, %c0_4] : memref<1x32xf32, #tpu.memory_space<vmem>>, vector<1x32xf32>
    %4 = vector.broadcast %3 : vector<1x32xf32> to vector<16x32xf32>
    %5 = arith.addf %2, %4 : vector<16x32xf32>
    %6 = arith.truncf %5 : vector<16x32xf32> to vector<16x32xbf16>
    %cst_5 = arith.constant 0.000000e+00 : bf16
    %7 = vector.broadcast %cst_5 : bf16 to vector<16x32xbf16>
    %8 = arith.cmpf ogt, %6, %7 : vector<16x32xbf16>
    %cst_6 = arith.constant 1.000980e-02 : bf16
    %9 = vector.broadcast %cst_6 : bf16 to vector<16x32xbf16>
    %10 = arith.mulf %9, %6 : vector<16x32xbf16>
    %11 = arith.select %8, %6, %10 : vector<16x32xi1>, vector<16x32xbf16>
    %c0_7 = arith.constant 0 : index
    %c0_8 = arith.constant 0 : index
    %12 = vector.load %arg4[%c0_7, %c0_8] : memref<32x32xbf16, #tpu.memory_space<vmem>>, vector<32x32xbf16>
    %cst_9 = arith.constant dense<0.000000e+00> : vector<16x32xf32>
    %13 = tpu.matmul %11, %12, %cst_9 {dimension_numbers = #tpu.dot_dimension_numbers<[1], [0], [0], [1], [0, 0, 1, 1], [], []>} : vector<16x32xbf16>, vector<32x32xbf16>, vector<16x32xf32> -> vector<16x32xf32>
    %c0_10 = arith.constant 0 : index
    %c0_11 = arith.constant 0 : index
    %14 = vector.load %arg5[%c0_10, %c0_11] : memref<1x32xf32, #tpu.memory_space<vmem>>, vector<1x32xf32>
    %15 = vector.broadcast %14 : vector<1x32xf32> to vector<16x32xf32>
    %16 = arith.addf %13, %15 : vector<16x32xf32>
    %17 = arith.truncf %16 : vector<16x32xf32> to vector<16x32xbf16>
    %c0_12 = arith.constant 0 : index
    %c0_13 = arith.constant 0 : index
    %18 = vector.load %arg6[%c0_12, %c0_13] : memref<32x160xbf16, #tpu.memory_space<vmem>>, vector<32x160xbf16>
    %cst_14 = arith.constant dense<0.000000e+00> : vector<16x160xf32>
    %19 = tpu.matmul %17, %18, %cst_14 {dimension_numbers = #tpu.dot_dimension_numbers<[1], [0], [0], [1], [0, 0, 1, 1], [], []>} : vector<16x32xbf16>, vector<32x160xbf16>, vector<16x160xf32> -> vector<16x160xf32>
    %c0_15 = arith.constant 0 : index
    %c0_16 = arith.constant 0 : index
    %20 = vector.load %arg7[%c0_15, %c0_16] : memref<1x160xf32, #tpu.memory_space<vmem>>, vector<1x160xf32>
    %21 = vector.broadcast %20 : vector<1x160xf32> to vector<16x160xf32>
    %22 = arith.addf %19, %21 : vector<16x160xf32>
    %23 = arith.truncf %22 : vector<16x160xf32> to vector<16x160xbf16>
    %24 = vector.extract_strided_slice %23 {offsets = [0, 0], sizes = [16, 128], strides = [1, 1]} : vector<16x160xbf16> to vector<16x128xbf16>
    %cst_17 = arith.constant 0.000000e+00 : bf16
    %25 = vector.broadcast %cst_17 : bf16 to vector<16x128xbf16>
    %26 = arith.maximumf %24, %25 : vector<16x128xbf16>
    %27 = vector.extract_strided_slice %23 {offsets = [0, 128], sizes = [16, 32], strides = [1, 1]} : vector<16x160xbf16> to vector<16x32xbf16>
    %c0_18 = arith.constant 0 : index
    %c0_19 = arith.constant 0 : index
    %28 = vector.load %arg8[%c0_18, %c0_19] : memref<128x32xbf16, #tpu.memory_space<vmem>>, vector<128x32xbf16>
    %cst_20 = arith.constant dense<0.000000e+00> : vector<16x32xf32>
    %29 = tpu.matmul %26, %28, %cst_20 {dimension_numbers = #tpu.dot_dimension_numbers<[1], [0], [0], [1], [0, 0, 1, 1], [], []>} : vector<16x128xbf16>, vector<128x32xbf16>, vector<16x32xf32> -> vector<16x32xf32>
    %c0_21 = arith.constant 0 : index
    %c0_22 = arith.constant 0 : index
    %30 = vector.load %arg9[%c0_21, %c0_22] : memref<1x32xf32, #tpu.memory_space<vmem>>, vector<1x32xf32>
    %31 = vector.broadcast %30 : vector<1x32xf32> to vector<16x32xf32>
    %32 = arith.addf %29, %31 : vector<16x32xf32>
    %33 = arith.truncf %32 : vector<16x32xf32> to vector<16x32xbf16>
    %cst_23 = arith.constant 0.000000e+00 : bf16
    %34 = vector.broadcast %cst_23 : bf16 to vector<16x32xbf16>
    %35 = arith.maximumf %33, %34 : vector<16x32xbf16>
    %c0_24 = arith.constant 0 : index
    %c0_25 = arith.constant 0 : index
    %36 = vector.load %arg10[%c0_24, %c0_25] : memref<32x32xbf16, #tpu.memory_space<vmem>>, vector<32x32xbf16>
    %cst_26 = arith.constant dense<0.000000e+00> : vector<16x32xf32>
    %37 = tpu.matmul %35, %36, %cst_26 {dimension_numbers = #tpu.dot_dimension_numbers<[1], [0], [0], [1], [0, 0, 1, 1], [], []>} : vector<16x32xbf16>, vector<32x32xbf16>, vector<16x32xf32> -> vector<16x32xf32>
    %c0_27 = arith.constant 0 : index
    %c0_28 = arith.constant 0 : index
    %38 = vector.load %arg11[%c0_27, %c0_28] : memref<1x32xf32, #tpu.memory_space<vmem>>, vector<1x32xf32>
    %39 = vector.broadcast %38 : vector<1x32xf32> to vector<16x32xf32>
    %40 = arith.addf %37, %39 : vector<16x32xf32>
    %41 = arith.truncf %40 : vector<16x32xf32> to vector<16x32xbf16>
    %cst_29 = arith.constant 0.000000e+00 : bf16
    %42 = vector.broadcast %cst_29 : bf16 to vector<16x32xbf16>
    %43 = arith.maximumf %41, %42 : vector<16x32xbf16>
    %44 = arith.addf %43, %27 : vector<16x32xbf16>
    %c0_30 = arith.constant 0 : index
    %c0_31 = arith.constant 0 : index
    %45 = vector.load %arg12[%c0_30, %c0_31] : memref<32x140xbf16, #tpu.memory_space<vmem>>, vector<32x140xbf16>
    %cst_32 = arith.constant dense<0.000000e+00> : vector<16x140xf32>
    %46 = tpu.matmul %44, %45, %cst_32 {dimension_numbers = #tpu.dot_dimension_numbers<[1], [0], [0], [1], [0, 0, 1, 1], [], []>} : vector<16x32xbf16>, vector<32x140xbf16>, vector<16x140xf32> -> vector<16x140xf32>
    %c0_33 = arith.constant 0 : index
    %c0_34 = arith.constant 0 : index
    %47 = vector.load %arg13[%c0_33, %c0_34] : memref<1x140xf32, #tpu.memory_space<vmem>>, vector<1x140xf32>
    %48 = vector.broadcast %47 : vector<1x140xf32> to vector<16x140xf32>
    %49 = arith.addf %46, %48 : vector<16x140xf32>
    %50 = arith.truncf %49 : vector<16x140xf32> to vector<16x140xbf16>
    %51 = vector.extract_strided_slice %50 {offsets = [0, 0], sizes = [16, 128], strides = [1, 1]} : vector<16x140xbf16> to vector<16x128xbf16>
    %cst_35 = arith.constant 0.000000e+00 : bf16
    %52 = vector.broadcast %cst_35 : bf16 to vector<16x128xbf16>
    %53 = arith.cmpf ogt, %51, %52 : vector<16x128xbf16>
    %cst_36 = arith.constant 1.000980e-02 : bf16
    %54 = vector.broadcast %cst_36 : bf16 to vector<16x128xbf16>
    %55 = arith.mulf %54, %51 : vector<16x128xbf16>
    %56 = arith.select %53, %51, %55 : vector<16x128xi1>, vector<16x128xbf16>
    %57 = vector.extract_strided_slice %50 {offsets = [0, 128], sizes = [16, 12], strides = [1, 1]} : vector<16x140xbf16> to vector<16x12xbf16>
    %c0_37 = arith.constant 0 : index
    %c0_38 = arith.constant 0 : index
    %58 = vector.load %arg14[%c0_37, %c0_38] : memref<128x12xbf16, #tpu.memory_space<vmem>>, vector<128x12xbf16>
    %cst_39 = arith.constant dense<0.000000e+00> : vector<16x12xf32>
    %59 = tpu.matmul %56, %58, %cst_39 {dimension_numbers = #tpu.dot_dimension_numbers<[1], [0], [0], [1], [0, 0, 1, 1], [], []>} : vector<16x128xbf16>, vector<128x12xbf16>, vector<16x12xf32> -> vector<16x12xf32>
    %c0_40 = arith.constant 0 : index
    %c0_41 = arith.constant 0 : index
    %60 = vector.load %arg15[%c0_40, %c0_41] : memref<1x12xf32, #tpu.memory_space<vmem>>, vector<1x12xf32>
    %61 = vector.broadcast %60 : vector<1x12xf32> to vector<16x12xf32>
    %62 = arith.addf %59, %61 : vector<16x12xf32>
    %63 = arith.truncf %62 : vector<16x12xf32> to vector<16x12xbf16>
    %cst_42 = arith.constant 0.000000e+00 : bf16
    %64 = vector.broadcast %cst_42 : bf16 to vector<16x12xbf16>
    %65 = arith.cmpf ogt, %63, %64 : vector<16x12xbf16>
    %cst_43 = arith.constant 1.000980e-02 : bf16
    %66 = vector.broadcast %cst_43 : bf16 to vector<16x12xbf16>
    %67 = arith.mulf %66, %63 : vector<16x12xbf16>
    %68 = arith.select %65, %63, %67 : vector<16x12xi1>, vector<16x12xbf16>
    %69 = arith.addf %68, %57 : vector<16x12xbf16>
    %c0_44 = arith.constant 0 : index
    %c0_45 = arith.constant 0 : index
    %70 = vector.load %arg16[%c0_44, %c0_45] : memref<12x140xbf16, #tpu.memory_space<vmem>>, vector<12x140xbf16>
    %cst_46 = arith.constant dense<0.000000e+00> : vector<16x140xf32>
    %71 = tpu.matmul %69, %70, %cst_46 {dimension_numbers = #tpu.dot_dimension_numbers<[1], [0], [0], [1], [0, 0, 1, 1], [], []>} : vector<16x12xbf16>, vector<12x140xbf16>, vector<16x140xf32> -> vector<16x140xf32>
    %72 = vector.extract_strided_slice %71 {offsets = [0, 0], sizes = [16, 3], strides = [1, 1]} : vector<16x140xf32> to vector<16x3xf32>
    %73 = vector.extract_strided_slice %71 {offsets = [0, 128], sizes = [16, 12], strides = [1, 1]} : vector<16x140xf32> to vector<16x12xf32>
    %74 = arith.extf %69 : vector<16x12xbf16> to vector<16x12xf32>
    %75 = arith.mulf %74, %74 : vector<16x12xf32>
    %cst_47 = arith.constant dense<0.000000e+00> : vector<16xf32>
    %76 = vector.multi_reduction <add>, %75, %cst_47 [1] : vector<16x12xf32> to vector<16xf32>
    %77 = vector.shape_cast %76 : vector<16xf32> to vector<16x1xf32>
    %cst_48 = arith.constant 2.000000e+00 : f32
    %78 = vector.broadcast %cst_48 : f32 to vector<16x3xf32>
    %79 = arith.mulf %78, %72 : vector<16x3xf32>
    %80 = vector.broadcast %77 : vector<16x1xf32> to vector<16x3xf32>
    %81 = arith.subf %80, %79 : vector<16x3xf32>
    %c0_49 = arith.constant 0 : index
    %c0_50 = arith.constant 0 : index
    %82 = vector.load %arg17[%c0_49, %c0_50] : memref<1x3xf32, #tpu.memory_space<vmem>>, vector<1x3xf32>
    %83 = vector.broadcast %82 : vector<1x3xf32> to vector<16x3xf32>
    %84 = arith.addf %81, %83 : vector<16x3xf32>
    %cst_51 = arith.constant 0.000000e+00 : f32
    %85 = vector.broadcast %cst_51 : f32 to vector<16x3xf32>
    %86 = arith.maximumf %84, %85 : vector<16x3xf32>
    %cst_52 = arith.constant 1.000000e+00 : f32
    %87 = vector.broadcast %cst_52 : f32 to vector<16x3xf32>
    %88 = arith.mulf %86, %87 : vector<16x3xf32>
    %cst_53 = arith.constant 1.000000e+00 : f32
    %89 = vector.broadcast %cst_53 : f32 to vector<16x3xf32>
    %90 = arith.addf %89, %88 : vector<16x3xf32>
    %cst_54 = arith.constant 1.000000e+00 : f32
    %91 = vector.broadcast %cst_54 : f32 to vector<16x3xf32>
    %92 = arith.divf %91, %90 : vector<16x3xf32>
    %cst_55 = arith.constant dense<0.000000e+00> : vector<16xf32>
    %93 = vector.multi_reduction <add>, %92, %cst_55 [1] : vector<16x3xf32> to vector<16xf32>
    %94 = vector.shape_cast %93 : vector<16xf32> to vector<16x1xf32>
    %95 = vector.broadcast %94 : vector<16x1xf32> to vector<16x3xf32>
    %96 = arith.divf %92, %95 : vector<16x3xf32>
    %97 = arith.mulf %73, %73 : vector<16x12xf32>
    %c0_56 = arith.constant 0 : index
    %c0_57 = arith.constant 0 : index
    %98 = vector.load %arg18[%c0_56, %c0_57] : memref<12x3xbf16, #tpu.memory_space<vmem>>, vector<12x3xbf16>
    %99 = arith.truncf %97 : vector<16x12xf32> to vector<16x12xbf16>
    %cst_58 = arith.constant dense<0.000000e+00> : vector<16x3xf32>
    %100 = tpu.matmul %99, %98, %cst_58 {dimension_numbers = #tpu.dot_dimension_numbers<[1], [0], [0], [1], [0, 0, 1, 1], [], []>} : vector<16x12xbf16>, vector<12x3xbf16>, vector<16x3xf32> -> vector<16x3xf32>
    %cst_59 = arith.constant 4.000000e+00 : f32
    %101 = vector.broadcast %cst_59 : f32 to vector<16x3xf32>
    %102 = arith.addf %100, %101 : vector<16x3xf32>
    %cst_60 = arith.constant 1.250000e-01 : f32
    %103 = vector.broadcast %cst_60 : f32 to vector<16x3xf32>
    %104 = arith.mulf %102, %103 : vector<16x3xf32>
    %cst_61 = arith.constant dense<0.000000e+00> : vector<16xf32>
    %105 = vector.multi_reduction <add>, %104, %cst_61 [1] : vector<16x3xf32> to vector<16xf32>
    %106 = vector.shape_cast %105 : vector<16xf32> to vector<16x1xf32>
    %107 = vector.broadcast %106 : vector<16x1xf32> to vector<16x3xf32>
    %108 = arith.divf %104, %107 : vector<16x3xf32>
    %109 = arith.extf %44 : vector<16x32xbf16> to vector<16x32xf32>
    %cst_62 = arith.constant 0.000000e+00 : f32
    %110 = vector.broadcast %cst_62 : f32 to vector<16x78xf32>
    %111 = tpu.concatenate %109, %74, %96, %108, %110 in 1 : vector<16x32xf32>, vector<16x12xf32>, vector<16x3xf32>, vector<16x3xf32>, vector<16x78xf32> -> vector<16x128xf32>
    %c0_63 = arith.constant 0 : index
    %c0_64 = arith.constant 0 : index
    %112 = vector.load %arg19[%c0_63, %c0_64] : memref<16x128xf32, #tpu.memory_space<vmem>>, vector<16x128xf32>
    tpu.vector_store %arg19[%c0_63, %c0_64], %111 {strides = array<i32>} : memref<16x128xf32, #tpu.memory_space<vmem>>, vector<16x128xf32>,
    return
  }
  func.func @transform_0(%arg0: i32) -> (i32, i32) {
    %c0_i32 = arith.constant 0 : i32
    %c0_i32_0 = arith.constant 0 : i32
    return %arg0, %c0_i32 : i32, i32
  }
  func.func @transform_1(%arg0: i32) -> (i32, i32) {
    %c0_i32 = arith.constant 0 : i32
    %c0_i32_0 = arith.constant 0 : i32
    %c0_i32_1 = arith.constant 0 : i32
    return %c0_i32, %c0_i32_0 : i32, i32
  }
  func.func @transform_2(%arg0: i32) -> (i32, i32) {
    %c0_i32 = arith.constant 0 : i32
    %c0_i32_0 = arith.constant 0 : i32
    %c0_i32_1 = arith.constant 0 : i32
    return %c0_i32, %c0_i32_0 : i32, i32
  }
  func.func @transform_3(%arg0: i32) -> (i32, i32) {
    %c0_i32 = arith.constant 0 : i32
    %c0_i32_0 = arith.constant 0 : i32
    %c0_i32_1 = arith.constant 0 : i32
    return %c0_i32, %c0_i32_0 : i32, i32
  }
  func.func @transform_4(%arg0: i32) -> (i32, i32) {
    %c0_i32 = arith.constant 0 : i32
    %c0_i32_0 = arith.constant 0 : i32
    %c0_i32_1 = arith.constant 0 : i32
    return %c0_i32, %c0_i32_0 : i32, i32
  }
  func.func @transform_5(%arg0: i32) -> (i32, i32) {
    %c0_i32 = arith.constant 0 : i32
    %c0_i32_0 = arith.constant 0 : i32
    %c0_i32_1 = arith.constant 0 : i32
    return %c0_i32, %c0_i32_0 : i32, i32
  }
  func.func @transform_6(%arg0: i32) -> (i32, i32) {
    %c0_i32 = arith.constant 0 : i32
    %c0_i32_0 = arith.constant 0 : i32
    %c0_i32_1 = arith.constant 0 : i32
    return %c0_i32, %c0_i32_0 : i32, i32
  }
  func.func @transform_7(%arg0: i32) -> (i32, i32) {
    %c0_i32 = arith.constant 0 : i32
    %c0_i32_0 = arith.constant 0 : i32
    %c0_i32_1 = arith.constant 0 : i32
    return %c0_i32, %c0_i32_0 : i32, i32
  }
  func.func @transform_8(%arg0: i32) -> (i32, i32) {
    %c0_i32 = arith.constant 0 : i32
    %c0_i32_0 = arith.constant 0 : i32
    %c0_i32_1 = arith.constant 0 : i32
    return %c0_i32, %c0_i32_0 : i32, i32
  }
  func.func @transform_9(%arg0: i32) -> (i32, i32) {
    %c0_i32 = arith.constant 0 : i32
    %c0_i32_0 = arith.constant 0 : i32
    %c0_i32_1 = arith.constant 0 : i32
    return %c0_i32, %c0_i32_0 : i32, i32
  }
  func.func @transform_10(%arg0: i32) -> (i32, i32) {
    %c0_i32 = arith.constant 0 : i32
    %c0_i32_0 = arith.constant 0 : i32
    %c0_i32_1 = arith.constant 0 : i32
    return %c0_i32, %c0_i32_0 : i32, i32
  }
  func.func @transform_11(%arg0: i32) -> (i32, i32) {
    %c0_i32 = arith.constant 0 : i32
    %c0_i32_0 = arith.constant 0 : i32
    %c0_i32_1 = arith.constant 0 : i32
    return %c0_i32, %c0_i32_0 : i32, i32
  }
  func.func @transform_12(%arg0: i32) -> (i32, i32) {
    %c0_i32 = arith.constant 0 : i32
    %c0_i32_0 = arith.constant 0 : i32
    %c0_i32_1 = arith.constant 0 : i32
    return %c0_i32, %c0_i32_0 : i32, i32
  }
  func.func @transform_13(%arg0: i32) -> (i32, i32) {
    %c0_i32 = arith.constant 0 : i32
    %c0_i32_0 = arith.constant 0 : i32
    %c0_i32_1 = arith.constant 0 : i32
    return %c0_i32, %c0_i32_0 : i32, i32
  }
  func.func @transform_14(%arg0: i32) -> (i32, i32) {
    %c0_i32 = arith.constant 0 : i32
    %c0_i32_0 = arith.constant 0 : i32
    %c0_i32_1 = arith.constant 0 : i32
    return %c0_i32, %c0_i32_0 : i32, i32
  }
  func.func @transform_15(%arg0: i32) -> (i32, i32) {
    %c0_i32 = arith.constant 0 : i32
    %c0_i32_0 = arith.constant 0 : i32
    %c0_i32_1 = arith.constant 0 : i32
    return %c0_i32, %c0_i32_0 : i32, i32
  }
  func.func @transform_16(%arg0: i32) -> (i32, i32) {
    %c0_i32 = arith.constant 0 : i32
    %c0_i32_0 = arith.constant 0 : i32
    %c0_i32_1 = arith.constant 0 : i32
    return %c0_i32, %c0_i32_0 : i32, i32
  }
  func.func @transform_17(%arg0: i32) -> (i32, i32) {
    %c0_i32 = arith.constant 0 : i32
    %c0_i32_0 = arith.constant 0 : i32
    %c0_i32_1 = arith.constant 0 : i32
    return %c0_i32, %c0_i32_0 : i32, i32
  }
  func.func @transform_18(%arg0: i32) -> (i32, i32) {
    %c0_i32 = arith.constant 0 : i32
    %c0_i32_0 = arith.constant 0 : i32
    return %arg0, %c0_i32 : i32, i32
  }
}

module attributes {stable_mosaic.version = 11 : i64} {
  func.func @_dcglc_head_kernel(%arg0: i32, %arg1: memref<16x32xbf16, #tpu.memory_space<vmem>>, %arg2: memref<32x32xbf16, #tpu.memory_space<vmem>>, %arg3: memref<1x32xf32, #tpu.memory_space<vmem>>, %arg4: memref<32x32xbf16, #tpu.memory_space<vmem>>, %arg5: memref<1x32xf32, #tpu.memory_space<vmem>>, %arg6: memref<32x160xbf16, #tpu.memory_space<vmem>>, %arg7: memref<1x160xf32, #tpu.memory_space<vmem>>, %arg8: memref<128x32xbf16, #tpu.memory_space<vmem>>, %arg9: memref<1x32xf32, #tpu.memory_space<vmem>>, %arg10: memref<32x32xbf16, #tpu.memory_space<vmem>>, %arg11: memref<1x32xf32, #tpu.memory_space<vmem>>, %arg12: memref<32x140xbf16, #tpu.memory_space<vmem>>, %arg13: memref<1x140xf32, #tpu.memory_space<vmem>>, %arg14: memref<128x12xbf16, #tpu.memory_space<vmem>>, %arg15: memref<1x12xf32, #tpu.memory_space<vmem>>, %arg16: memref<12x140xbf16, #tpu.memory_space<vmem>>, %arg17: memref<1x3xf32, #tpu.memory_space<vmem>>, %arg18: memref<12x3xbf16, #tpu.memory_space<vmem>>, %arg19: memref<16x128xf32, #tpu.memory_space<vmem>>) attributes {dimension_semantics = [#tpu.dimension_semantics<parallel>], iteration_bounds = array<i64: 1>, scalar_prefetch = 0 : i64, scratch_operands = 0 : i64, tpu.core_type = #tpu.core_type<tc>, window_params = [{transform_indices = @transform_0, window_bounds = array<i64: 16, 32>}, {pipeline_mode = #tpu.pipeline_mode<synchronous>, transform_indices = @transform_1, window_bounds = array<i64: 32, 32>}, {pipeline_mode = #tpu.pipeline_mode<synchronous>, transform_indices = @transform_2, window_bounds = array<i64: 1, 32>}, {pipeline_mode = #tpu.pipeline_mode<synchronous>, transform_indices = @transform_3, window_bounds = array<i64: 32, 32>}, {pipeline_mode = #tpu.pipeline_mode<synchronous>, transform_indices = @transform_4, window_bounds = array<i64: 1, 32>}, {pipeline_mode = #tpu.pipeline_mode<synchronous>, transform_indices = @transform_5, window_bounds = array<i64: 32, 160>}, {pipeline_mode = #tpu.pipeline_mode<synchronous>, transform_indices = @transform_6, window_bounds = array<i64: 1, 160>}, {pipeline_mode = #tpu.pipeline_mode<synchronous>, transform_indices = @transform_7, window_bounds = array<i64: 128, 32>}, {pipeline_mode = #tpu.pipeline_mode<synchronous>, transform_indices = @transform_8, window_bounds = array<i64: 1, 32>}, {pipeline_mode = #tpu.pipeline_mode<synchronous>, transform_indices = @transform_9, window_bounds = array<i64: 32, 32>}, {pipeline_mode = #tpu.pipeline_mode<synchronous>, transform_indices = @transform_10, window_bounds = array<i64: 1, 32>}, {pipeline_mode = #tpu.pipeline_mode<synchronous>, transform_indices = @transform_11, window_bounds = array<i64: 32, 140>}, {pipeline_mode = #tpu.pipeline_mode<synchronous>, transform_indices = @transform_12, window_bounds = array<i64: 1, 140>}, {pipeline_mode = #tpu.pipeline_mode<synchronous>, transform_indices = @transform_13, window_bounds = array<i64: 128, 12>}, {pipeline_mode = #tpu.pipeline_mode<synchronous>, transform_indices = @transform_14, window_bounds = array<i64: 1, 12>}, {pipeline_mode = #tpu.pipeline_mode<synchronous>, transform_indices = @transform_15, window_bounds = array<i64: 12, 140>}, {pipeline_mode = #tpu.pipeline_mode<synchronous>, transform_indices = @transform_16, window_bounds = array<i64: 1, 3>}, {pipeline_mode = #tpu.pipeline_mode<synchronous>, transform_indices = @transform_17, window_bounds = array<i64: 12, 3>}, {transform_indices = @transform_18, window_bounds = array<i64: 16, 128>}]} {
    %c0 = arith.constant 0 : index
    %c0_0 = arith.constant 0 : index
    %0 = vector.load %arg1[%c0, %c0_0] : memref<16x32xbf16, #tpu.memory_space<vmem>>, vector<16x32xbf16>
    %c0_1 = arith.constant 0 : index
    %c0_2 = arith.constant 0 : index
    %1 = vector.load %arg2[%c0_1, %c0_2] : memref<32x32xbf16, #tpu.memory_space<vmem>>, vector<32x32xbf16>
    %cst = arith.constant dense<0.000000e+00> : vector<16x32xf32>
    %2 = tpu.matmul %0, %1, %cst {dimension_numbers = #tpu.dot_dimension_numbers<[1], [0], [0], [1], [0, 0, 1, 1], [], []>} : vector<16x32xbf16>, vector<32x32xbf16>, vector<16x32xf32> -> vector<16x32xf32>
    %c0_3 = arith.constant 0 : index
    %c0_4 = arith.constant 0 : index
    %3 = vector.load %arg3[%c0_3, %c0_4] : memref<1x32xf32, #tpu.memory_space<vmem>>, vector<1x32xf32>
    %4 = vector.broadcast %3 : vector<1x32xf32> to vector<16x32xf32>
    %5 = arith.addf %2, %4 : vector<16x32xf32>
    %6 = arith.truncf %5 : vector<16x32xf32> to vector<16x32xbf16>
    %cst_5 = arith.constant 0.000000e+00 : bf16
    %7 = vector.broadcast %cst_5 : bf16 to vector<16x32xbf16>
    %8 = arith.cmpf ogt, %6, %7 : vector<16x32xbf16>
    %cst_6 = arith.constant 1.000980e-02 : bf16
    %9 = vector.broadcast %cst_6 : bf16 to vector<16x32xbf16>
    %10 = arith.mulf %9, %6 : vector<16x32xbf16>
    %11 = arith.select %8, %6, %10 : vector<16x32xi1>, vector<16x32xbf16>
    %c0_7 = arith.constant 0 : index
    %c0_8 = arith.constant 0 : index
    %12 = vector.load %arg4[%c0_7, %c0_8] : memref<32x32xbf16, #tpu.memory_space<vmem>>, vector<32x32xbf16>
    %cst_9 = arith.constant dense<0.000000e+00> : vector<16x32xf32>
    %13 = tpu.matmul %11, %12, %cst_9 {dimension_numbers = #tpu.dot_dimension_numbers<[1], [0], [0], [1], [0, 0, 1, 1], [], []>} : vector<16x32xbf16>, vector<32x32xbf16>, vector<16x32xf32> -> vector<16x32xf32>
    %c0_10 = arith.constant 0 : index
    %c0_11 = arith.constant 0 : index
    %14 = vector.load %arg5[%c0_10, %c0_11] : memref<1x32xf32, #tpu.memory_space<vmem>>, vector<1x32xf32>
    %15 = vector.broadcast %14 : vector<1x32xf32> to vector<16x32xf32>
    %16 = arith.addf %13, %15 : vector<16x32xf32>
    %17 = arith.truncf %16 : vector<16x32xf32> to vector<16x32xbf16>
    %c0_12 = arith.constant 0 : index
    %c0_13 = arith.constant 0 : index
    %18 = vector.load %arg6[%c0_12, %c0_13] : memref<32x160xbf16, #tpu.memory_space<vmem>>, vector<32x160xbf16>
    %cst_14 = arith.constant dense<0.000000e+00> : vector<16x160xf32>
    %19 = tpu.matmul %17, %18, %cst_14 {dimension_numbers = #tpu.dot_dimension_numbers<[1], [0], [0], [1], [0, 0, 1, 1], [], []>} : vector<16x32xbf16>, vector<32x160xbf16>, vector<16x160xf32> -> vector<16x160xf32>
    %c0_15 = arith.constant 0 : index
    %c0_16 = arith.constant 0 : index
    %20 = vector.load %arg7[%c0_15, %c0_16] : memref<1x160xf32, #tpu.memory_space<vmem>>, vector<1x160xf32>
    %21 = vector.broadcast %20 : vector<1x160xf32> to vector<16x160xf32>
    %22 = arith.addf %19, %21 : vector<16x160xf32>
    %23 = arith.truncf %22 : vector<16x160xf32> to vector<16x160xbf16>
    %24 = vector.extract_strided_slice %23 {offsets = [0, 0], sizes = [16, 128], strides = [1, 1]} : vector<16x160xbf16> to vector<16x128xbf16>
    %cst_17 = arith.constant 0.000000e+00 : bf16
    %25 = vector.broadcast %cst_17 : bf16 to vector<16x128xbf16>
    %26 = arith.maximumf %24, %25 : vector<16x128xbf16>
    %27 = vector.extract_strided_slice %23 {offsets = [0, 128], sizes = [16, 32], strides = [1, 1]} : vector<16x160xbf16> to vector<16x32xbf16>
    %c0_18 = arith.constant 0 : index
    %c0_19 = arith.constant 0 : index
    %28 = vector.load %arg8[%c0_18, %c0_19] : memref<128x32xbf16, #tpu.memory_space<vmem>>, vector<128x32xbf16>
    %cst_20 = arith.constant dense<0.000000e+00> : vector<16x32xf32>
    %29 = tpu.matmul %26, %28, %cst_20 {dimension_numbers = #tpu.dot_dimension_numbers<[1], [0], [0], [1], [0, 0, 1, 1], [], []>} : vector<16x128xbf16>, vector<128x32xbf16>, vector<16x32xf32> -> vector<16x32xf32>
    %c0_21 = arith.constant 0 : index
    %c0_22 = arith.constant 0 : index
    %30 = vector.load %arg9[%c0_21, %c0_22] : memref<1x32xf32, #tpu.memory_space<vmem>>, vector<1x32xf32>
    %31 = vector.broadcast %30 : vector<1x32xf32> to vector<16x32xf32>
    %32 = arith.addf %29, %31 : vector<16x32xf32>
    %33 = arith.truncf %32 : vector<16x32xf32> to vector<16x32xbf16>
    %cst_23 = arith.constant 0.000000e+00 : bf16
    %34 = vector.broadcast %cst_23 : bf16 to vector<16x32xbf16>
    %35 = arith.maximumf %33, %34 : vector<16x32xbf16>
    %c0_24 = arith.constant 0 : index
    %c0_25 = arith.constant 0 : index
    %36 = vector.load %arg10[%c0_24, %c0_25] : memref<32x32xbf16, #tpu.memory_space<vmem>>, vector<32x32xbf16>
    %cst_26 = arith.constant dense<0.000000e+00> : vector<16x32xf32>
    %37 = tpu.matmul %35, %36, %cst_26 {dimension_numbers = #tpu.dot_dimension_numbers<[1], [0], [0], [1], [0, 0, 1, 1], [], []>} : vector<16x32xbf16>, vector<32x32xbf16>, vector<16x32xf32> -> vector<16x32xf32>
    %c0_27 = arith.constant 0 : index
    %c0_28 = arith.constant 0 : index
    %38 = vector.load %arg11[%c0_27, %c0_28] : memref<1x32xf32, #tpu.memory_space<vmem>>, vector<1x32xf32>
    %39 = vector.broadcast %38 : vector<1x32xf32> to vector<16x32xf32>
    %40 = arith.addf %37, %39 : vector<16x32xf32>
    %41 = arith.truncf %40 : vector<16x32xf32> to vector<16x32xbf16>
    %cst_29 = arith.constant 0.000000e+00 : bf16
    %42 = vector.broadcast %cst_29 : bf16 to vector<16x32xbf16>
    %43 = arith.maximumf %41, %42 : vector<16x32xbf16>
    %44 = arith.addf %43, %27 : vector<16x32xbf16>
    %c0_30 = arith.constant 0 : index
    %c0_31 = arith.constant 0 : index
    %45 = vector.load %arg12[%c0_30, %c0_31] : memref<32x140xbf16, #tpu.memory_space<vmem>>, vector<32x140xbf16>
    %cst_32 = arith.constant dense<0.000000e+00> : vector<16x140xf32>
    %46 = tpu.matmul %44, %45, %cst_32 {dimension_numbers = #tpu.dot_dimension_numbers<[1], [0], [0], [1], [0, 0, 1, 1], [], []>} : vector<16x32xbf16>, vector<32x140xbf16>, vector<16x140xf32> -> vector<16x140xf32>
    %c0_33 = arith.constant 0 : index
    %c0_34 = arith.constant 0 : index
    %47 = vector.load %arg13[%c0_33, %c0_34] : memref<1x140xf32, #tpu.memory_space<vmem>>, vector<1x140xf32>
    %48 = vector.broadcast %47 : vector<1x140xf32> to vector<16x140xf32>
    %49 = arith.addf %46, %48 : vector<16x140xf32>
    %50 = arith.truncf %49 : vector<16x140xf32> to vector<16x140xbf16>
    %51 = vector.extract_strided_slice %50 {offsets = [0, 0], sizes = [16, 128], strides = [1, 1]} : vector<16x140xbf16> to vector<16x128xbf16>
    %cst_35 = arith.constant 0.000000e+00 : bf16
    %52 = vector.broadcast %cst_35 : bf16 to vector<16x128xbf16>
    %53 = arith.cmpf ogt, %51, %52 : vector<16x128xbf16>
    %cst_36 = arith.constant 1.000980e-02 : bf16
    %54 = vector.broadcast %cst_36 : bf16 to vector<16x128xbf16>
    %55 = arith.mulf %54, %51 : vector<16x128xbf16>
    %56 = arith.select %53, %51, %55 : vector<16x128xi1>, vector<16x128xbf16>
    %57 = vector.extract_strided_slice %50 {offsets = [0, 128], sizes = [16, 12], strides = [1, 1]} : vector<16x140xbf16> to vector<16x12xbf16>
    %c0_37 = arith.constant 0 : index
    %c0_38 = arith.constant 0 : index
    %58 = vector.load %arg14[%c0_37, %c0_38] : memref<128x12xbf16, #tpu.memory_space<vmem>>, vector<128x12xbf16>
    %cst_39 = arith.constant dense<0.000000e+00> : vector<16x12xf32>
    %59 = tpu.matmul %56, %58, %cst_39 {dimension_numbers = #tpu.dot_dimension_numbers<[1], [0], [0], [1], [0, 0, 1, 1], [], []>} : vector<16x128xbf16>, vector<128x12xbf16>, vector<16x12xf32> -> vector<16x12xf32>
    %c0_40 = arith.constant 0 : index
    %c0_41 = arith.constant 0 : index
    %60 = vector.load %arg15[%c0_40, %c0_41] : memref<1x12xf32, #tpu.memory_space<vmem>>, vector<1x12xf32>
    %61 = vector.broadcast %60 : vector<1x12xf32> to vector<16x12xf32>
    %62 = arith.addf %59, %61 : vector<16x12xf32>
    %63 = arith.truncf %62 : vector<16x12xf32> to vector<16x12xbf16>
    %cst_42 = arith.constant 0.000000e+00 : bf16
    %64 = vector.broadcast %cst_42 : bf16 to vector<16x12xbf16>
    %65 = arith.cmpf ogt, %63, %64 : vector<16x12xbf16>
    %cst_43 = arith.constant 1.000980e-02 : bf16
    %66 = vector.broadcast %cst_43 : bf16 to vector<16x12xbf16>
    %67 = arith.mulf %66, %63 : vector<16x12xbf16>
    %68 = arith.select %65, %63, %67 : vector<16x12xi1>, vector<16x12xbf16>
    %69 = arith.addf %68, %57 : vector<16x12xbf16>
    %c0_44 = arith.constant 0 : index
    %c0_45 = arith.constant 0 : index
    %70 = vector.load %arg16[%c0_44, %c0_45] : memref<12x140xbf16, #tpu.memory_space<vmem>>, vector<12x140xbf16>
    %cst_46 = arith.constant dense<0.000000e+00> : vector<16x140xf32>
    %71 = tpu.matmul %69, %70, %cst_46 {dimension_numbers = #tpu.dot_dimension_numbers<[1], [0], [0], [1], [0, 0, 1, 1], [], []>} : vector<16x12xbf16>, vector<12x140xbf16>, vector<16x140xf32> -> vector<16x140xf32>
    %72 = vector.extract_strided_slice %71 {offsets = [0, 0], sizes = [16, 3], strides = [1, 1]} : vector<16x140xf32> to vector<16x3xf32>
    %73 = vector.extract_strided_slice %71 {offsets = [0, 128], sizes = [16, 12], strides = [1, 1]} : vector<16x140xf32> to vector<16x12xf32>
    %74 = arith.extf %69 : vector<16x12xbf16> to vector<16x12xf32>
    %75 = arith.mulf %74, %74 : vector<16x12xf32>
    %cst_47 = arith.constant dense<0.000000e+00> : vector<16xf32>
    %76 = vector.multi_reduction <add>, %75, %cst_47 [1] : vector<16x12xf32> to vector<16xf32>
    %77 = vector.shape_cast %76 : vector<16xf32> to vector<16x1xf32>
    %cst_48 = arith.constant 2.000000e+00 : f32
    %78 = vector.broadcast %cst_48 : f32 to vector<16x3xf32>
    %79 = arith.mulf %78, %72 : vector<16x3xf32>
    %80 = vector.broadcast %77 : vector<16x1xf32> to vector<16x3xf32>
    %81 = arith.subf %80, %79 : vector<16x3xf32>
    %c0_49 = arith.constant 0 : index
    %c0_50 = arith.constant 0 : index
    %82 = vector.load %arg17[%c0_49, %c0_50] : memref<1x3xf32, #tpu.memory_space<vmem>>, vector<1x3xf32>
    %83 = vector.broadcast %82 : vector<1x3xf32> to vector<16x3xf32>
    %84 = arith.addf %81, %83 : vector<16x3xf32>
    %cst_51 = arith.constant 0.000000e+00 : f32
    %85 = vector.broadcast %cst_51 : f32 to vector<16x3xf32>
    %86 = arith.maximumf %84, %85 : vector<16x3xf32>
    %cst_52 = arith.constant 1.000000e+00 : f32
    %87 = vector.broadcast %cst_52 : f32 to vector<16x3xf32>
    %88 = arith.mulf %86, %87 : vector<16x3xf32>
    %cst_53 = arith.constant 1.000000e+00 : f32
    %89 = vector.broadcast %cst_53 : f32 to vector<16x3xf32>
    %90 = arith.addf %89, %88 : vector<16x3xf32>
    %cst_54 = arith.constant 1.000000e+00 : f32
    %91 = vector.broadcast %cst_54 : f32 to vector<16x3xf32>
    %92 = arith.divf %91, %90 : vector<16x3xf32>
    %cst_55 = arith.constant dense<0.000000e+00> : vector<16xf32>
    %93 = vector.multi_reduction <add>, %92, %cst_55 [1] : vector<16x3xf32> to vector<16xf32>
    %94 = vector.shape_cast %93 : vector<16xf32> to vector<16x1xf32>
    %95 = vector.broadcast %94 : vector<16x1xf32> to vector<16x3xf32>
    %96 = arith.divf %92, %95 : vector<16x3xf32>
    %97 = arith.mulf %73, %73 : vector<16x12xf32>
    %c0_56 = arith.constant 0 : index
    %c0_57 = arith.constant 0 : index
    %98 = vector.load %arg18[%c0_56, %c0_57] : memref<12x3xbf16, #tpu.memory_space<vmem>>, vector<12x3xbf16>
    %99 = arith.truncf %97 : vector<16x12xf32> to vector<16x12xbf16>
    %cst_58 = arith.constant dense<0.000000e+00> : vector<16x3xf32>
    %100 = tpu.matmul %99, %98, %cst_58 {dimension_numbers = #tpu.dot_dimension_numbers<[1], [0], [0], [1], [0, 0, 1, 1], [], []>} : vector<16x12xbf16>, vector<12x3xbf16>, vector<16x3xf32> -> vector<16x3xf32>
    %cst_59 = arith.constant 4.000000e+00 : f32
    %101 = vector.broadcast %cst_59 : f32 to vector<16x3xf32>
    %102 = arith.addf %100, %101 : vector<16x3xf32>
    %cst_60 = arith.constant 1.250000e-01 : f32
    %103 = vector.broadcast %cst_60 : f32 to vector<16x3xf32>
    %104 = arith.mulf %102, %103 : vector<16x3xf32>
    %cst_61 = arith.constant dense<0.000000e+00> : vector<16xf32>
    %105 = vector.multi_reduction <add>, %104, %cst_61 [1] : vector<16x3xf32> to vector<16xf32>
    %106 = vector.shape_cast %105 : vector<16xf32> to vector<16x1xf32>
    %107 = vector.broadcast %106 : vector<16x1xf32> to vector<16x3xf32>
    %108 = arith.divf %104, %107 : vector<16x3xf32>
    %109 = arith.extf %44 : vector<16x32xbf16> to vector<16x32xf32>
    %cst_62 = arith.constant 0.000000e+00 : f32
    %110 = vector.broadcast %cst_62 : f32 to vector<16x78xf32>
    %111 = tpu.concatenate %109, %74, %96, %108, %110 in 1 : vector<16x32xf32>, vector<16x12xf32>, vector<16x3xf32>, vector<16x3xf32>, vector<16x78xf32> -> vector<16x128xf32>
    %c0_63 = arith.constant 0 : index
    %c0_64 = arith.constant 0 : index
    %112 = vector.load %arg19[%c0_63, %c0_64] : memref<16x128xf32, #tpu.memory_space<vmem>>, vector<16x128xf32>
    tpu.vector_store %arg19[%c0_63, %c0_64], %111 {strides = array<i32>} : memref<16x128xf32, #tpu.memory_space<vmem>>, vector<16x128xf32>,
    return
  }
  func.func @transform_0(%arg0: i32) -> (i32, i32) {
    %c0_i32 = arith.constant 0 : i32
    %c0_i32_0 = arith.constant 0 : i32
    return %arg0, %c0_i32 : i32, i32
  }
  func.func @transform_1(%arg0: i32) -> (i32, i32) {
    %c0_i32 = arith.constant 0 : i32
    %c0_i32_0 = arith.constant 0 : i32
    %c0_i32_1 = arith.constant 0 : i32
    return %c0_i32, %c0_i32_0 : i32, i32
  }
  func.func @transform_2(%arg0: i32) -> (i32, i32) {
    %c0_i32 = arith.constant 0 : i32
    %c0_i32_0 = arith.constant 0 : i32
    %c0_i32_1 = arith.constant 0 : i32
    return %c0_i32, %c0_i32_0 : i32, i32
  }
  func.func @transform_3(%arg0: i32) -> (i32, i32) {
    %c0_i32 = arith.constant 0 : i32
    %c0_i32_0 = arith.constant 0 : i32
    %c0_i32_1 = arith.constant 0 : i32
    return %c0_i32, %c0_i32_0 : i32, i32
  }
  func.func @transform_4(%arg0: i32) -> (i32, i32) {
    %c0_i32 = arith.constant 0 : i32
    %c0_i32_0 = arith.constant 0 : i32
    %c0_i32_1 = arith.constant 0 : i32
    return %c0_i32, %c0_i32_0 : i32, i32
  }
  func.func @transform_5(%arg0: i32) -> (i32, i32) {
    %c0_i32 = arith.constant 0 : i32
    %c0_i32_0 = arith.constant 0 : i32
    %c0_i32_1 = arith.constant 0 : i32
    return %c0_i32, %c0_i32_0 : i32, i32
  }
  func.func @transform_6(%arg0: i32) -> (i32, i32) {
    %c0_i32 = arith.constant 0 : i32
    %c0_i32_0 = arith.constant 0 : i32
    %c0_i32_1 = arith.constant 0 : i32
    return %c0_i32, %c0_i32_0 : i32, i32
  }
  func.func @transform_7(%arg0: i32) -> (i32, i32) {
    %c0_i32 = arith.constant 0 : i32
    %c0_i32_0 = arith.constant 0 : i32
    %c0_i32_1 = arith.constant 0 : i32
    return %c0_i32, %c0_i32_0 : i32, i32
  }
  func.func @transform_8(%arg0: i32) -> (i32, i32) {
    %c0_i32 = arith.constant 0 : i32
    %c0_i32_0 = arith.constant 0 : i32
    %c0_i32_1 = arith.constant 0 : i32
    return %c0_i32, %c0_i32_0 : i32, i32
  }
  func.func @transform_9(%arg0: i32) -> (i32, i32) {
    %c0_i32 = arith.constant 0 : i32
    %c0_i32_0 = arith.constant 0 : i32
    %c0_i32_1 = arith.constant 0 : i32
    return %c0_i32, %c0_i32_0 : i32, i32
  }
  func.func @transform_10(%arg0: i32) -> (i32, i32) {
    %c0_i32 = arith.constant 0 : i32
    %c0_i32_0 = arith.constant 0 : i32
    %c0_i32_1 = arith.constant 0 : i32
    return %c0_i32, %c0_i32_0 : i32, i32
  }
  func.func @transform_11(%arg0: i32) -> (i32, i32) {
    %c0_i32 = arith.constant 0 : i32
    %c0_i32_0 = arith.constant 0 : i32
    %c0_i32_1 = arith.constant 0 : i32
    return %c0_i32, %c0_i32_0 : i32, i32
  }
  func.func @transform_12(%arg0: i32) -> (i32, i32) {
    %c0_i32 = arith.constant 0 : i32
    %c0_i32_0 = arith.constant 0 : i32
    %c0_i32_1 = arith.constant 0 : i32
    return %c0_i32, %c0_i32_0 : i32, i32
  }
  func.func @transform_13(%arg0: i32) -> (i32, i32) {
    %c0_i32 = arith.constant 0 : i32
    %c0_i32_0 = arith.constant 0 : i32
    %c0_i32_1 = arith.constant 0 : i32
    return %c0_i32, %c0_i32_0 : i32, i32
  }
  func.func @transform_14(%arg0: i32) -> (i32, i32) {
    %c0_i32 = arith.constant 0 : i32
    %c0_i32_0 = arith.constant 0 : i32
    %c0_i32_1 = arith.constant 0 : i32
    return %c0_i32, %c0_i32_0 : i32, i32
  }
  func.func @transform_15(%arg0: i32) -> (i32, i32) {
    %c0_i32 = arith.constant 0 : i32
    %c0_i32_0 = arith.constant 0 : i32
    %c0_i32_1 = arith.constant 0 : i32
    return %c0_i32, %c0_i32_0 : i32, i32
  }
  func.func @transform_16(%arg0: i32) -> (i32, i32) {
    %c0_i32 = arith.constant 0 : i32
    %c0_i32_0 = arith.constant 0 : i32
    %c0_i32_1 = arith.constant 0 : i32
    return %c0_i32, %c0_i32_0 : i32, i32
  }
  func.func @transform_17(%arg0: i32) -> (i32, i32) {
    %c0_i32 = arith.constant 0 : i32
    %c0_i32_0 = arith.constant 0 : i32
    %c0_i32_1 = arith.constant 0 : i32
    return %c0_i32, %c0_i32_0 : i32, i32
  }
  func.func @transform_18(%arg0: i32) -> (i32, i32) {
    %c0_i32 = arith.constant 0 : i32
    %c0_i32_0 = arith.constant 0 : i32
    return %arg0, %c0_i32 : i32, i32
  }
}

</mosaic_0001>

<llo_original>
// kernel: tpu_custom_call.1
$region0: #{tpu_custom_call.1}
  #allocation0 [shape = 'u32[]', space=smem, size = 0x4, offset = 0x4, fixed_abs, tag = 'smem constant byte address 0x4 - core index']
  #allocation1 [shape = 'u32[144,128]{1,0:T(1,128)}', space=vmem, size = 0x12000, scoped, tag = 'internal scratch']
  %s0 = inlined_call_operand.vmem [shape: bf16[16,32], index: 0, kind: input, shape index: {}]
  %s1 = inlined_call_operand.vmem [shape: bf16[32,32], index: 1, kind: input, shape index: {}]
  %s2 = inlined_call_operand.vmem [shape: f32[1,32], index: 2, kind: input, shape index: {}]
  %s3 = inlined_call_operand.vmem [shape: bf16[32,32], index: 3, kind: input, shape index: {}]
  %s4 = inlined_call_operand.vmem [shape: f32[1,32], index: 4, kind: input, shape index: {}]
  %s5 = inlined_call_operand.vmem [shape: bf16[32,160], index: 5, kind: input, shape index: {}]
  %s6 = inlined_call_operand.vmem [shape: f32[1,160], index: 6, kind: input, shape index: {}]
  %s7 = inlined_call_operand.vmem [shape: bf16[128,32], index: 7, kind: input, shape index: {}]
  %s8 = inlined_call_operand.vmem [shape: f32[1,32], index: 8, kind: input, shape index: {}]
  %s9 = inlined_call_operand.vmem [shape: bf16[32,32], index: 9, kind: input, shape index: {}]
  %s10 = inlined_call_operand.vmem [shape: f32[1,32], index: 10, kind: input, shape index: {}]
  %s11 = inlined_call_operand.vmem [shape: bf16[32,140], index: 11, kind: input, shape index: {}]
  %s12 = inlined_call_operand.vmem [shape: f32[1,140], index: 12, kind: input, shape index: {}]
  %s13 = inlined_call_operand.vmem [shape: bf16[128,12], index: 13, kind: input, shape index: {}]
  %s14 = inlined_call_operand.vmem [shape: f32[1,12], index: 14, kind: input, shape index: {}]
  %s15 = inlined_call_operand.vmem [shape: bf16[12,140], index: 15, kind: input, shape index: {}]
  %s16 = inlined_call_operand.vmem [shape: f32[1,3], index: 16, kind: input, shape index: {}]
  %s17 = inlined_call_operand.vmem [shape: bf16[12,3], index: 17, kind: input, shape index: {}]
  %s18 = inlined_call_operand.hbm [shape: f32[16,128], index: 18, kind: output, shape index: {}]
  %s19 = sld [smem:[#allocation0]]
  $region82: #{tpu_custom_call.1} parent=0
    _
  %s21 = ssub.s32 1, %s19
  %s22 = scalar_select 0, %s21, %s19
  $region1: #{tpu_custom_call.1} parent=0
    #allocation2 [shape = 'u8[8192]{0}', space=vmem, size = 0x2000, scoped, tag = 'output window, operand 0, single buffered']
    #allocation3 [shape = 's32[1]{0}', space=sflag, size = 0x4, scoped, tag = 'scoped memory for tpu_custom_call.1']
    %23 = vsyncpa [#allocation3], 0
    // Predicated region
    $region2: #{tpu_custom_call.1} parent=1 // pred_check
      _
    $region3: #{tpu_custom_call.1} parent=1 // pred_check_branch
      %25 = sbr.rel (0) target = $region5
    $region4: #{tpu_custom_call.1} parent=1 // pred_region
      _
    $region5: #{tpu_custom_call.1} parent=1 // pred_fallthru
      _
    // Predicated region
    $region6: #{tpu_custom_call.1} parent=1 // pred_check
      _
    $region7: #{tpu_custom_call.1} parent=1 // pred_check_branch
      %27 = sbr.rel (0) target = $region9
    $region8: #{tpu_custom_call.1} parent=1 // pred_region
      _
    $region9: #{tpu_custom_call.1} parent=1 // pred_fallthru
      _
    // Predicated region
    $region10: #{tpu_custom_call.1} parent=1 // pred_check
      _
    $region11: #{tpu_custom_call.1} parent=1 // pred_check_branch
      %29 = sbr.rel (0) target = $region13
    $region12: #{tpu_custom_call.1} parent=1 // pred_region
      _
    $region13: #{tpu_custom_call.1} parent=1 // pred_fallthru
      _
    // Predicated region
    $region14: #{tpu_custom_call.1} parent=1 // pred_check
      _
    $region15: #{tpu_custom_call.1} parent=1 // pred_check_branch
      %31 = sbr.rel (0) target = $region17
    $region16: #{tpu_custom_call.1} parent=1 // pred_region
      _
    $region17: #{tpu_custom_call.1} parent=1 // pred_fallthru
      _
    // Predicated region
    $region18: #{tpu_custom_call.1} parent=1 // pred_check
      _
    $region19: #{tpu_custom_call.1} parent=1 // pred_check_branch
      %33 = sbr.rel (0) target = $region21
    $region20: #{tpu_custom_call.1} parent=1 // pred_region
      _
    $region21: #{tpu_custom_call.1} parent=1 // pred_fallthru
      _
    // Predicated region
    $region22: #{tpu_custom_call.1} parent=1 // pred_check
      _
    $region23: #{tpu_custom_call.1} parent=1 // pred_check_branch
      %35 = sbr.rel (0) target = $region25
    $region24: #{tpu_custom_call.1} parent=1 // pred_region
      _
    $region25: #{tpu_custom_call.1} parent=1 // pred_fallthru
      _
    // Predicated region
    $region26: #{tpu_custom_call.1} parent=1 // pred_check
      _
    $region27: #{tpu_custom_call.1} parent=1 // pred_check_branch
      %37 = sbr.rel (0) target = $region29
    $region28: #{tpu_custom_call.1} parent=1 // pred_region
      _
    $region29: #{tpu_custom_call.1} parent=1 // pred_fallthru
      _
    // Predicated region
    $region30: #{tpu_custom_call.1} parent=1 // pred_check
      _
    $region31: #{tpu_custom_call.1} parent=1 // pred_check_branch
      %39 = sbr.rel (0) target = $region33
    $region32: #{tpu_custom_call.1} parent=1 // pred_region
      _
    $region33: #{tpu_custom_call.1} parent=1 // pred_fallthru
      _
    // Predicated region
    $region34: #{tpu_custom_call.1} parent=1 // pred_check
      _
    $region35: #{tpu_custom_call.1} parent=1 // pred_check_branch
      %41 = sbr.rel (0) target = $region37
    $region36: #{tpu_custom_call.1} parent=1 // pred_region
      _
    $region37: #{tpu_custom_call.1} parent=1 // pred_fallthru
      _
    // Predicated region
    $region38: #{tpu_custom_call.1} parent=1 // pred_check
      _
    $region39: #{tpu_custom_call.1} parent=1 // pred_check_branch
      %43 = sbr.rel (0) target = $region41
    $region40: #{tpu_custom_call.1} parent=1 // pred_region
      _
    $region41: #{tpu_custom_call.1} parent=1 // pred_fallthru
      _
    // Predicated region
    $region42: #{tpu_custom_call.1} parent=1 // pred_check
      _
    $region43: #{tpu_custom_call.1} parent=1 // pred_check_branch
      %45 = sbr.rel (0) target = $region45
    $region44: #{tpu_custom_call.1} parent=1 // pred_region
      _
    $region45: #{tpu_custom_call.1} parent=1 // pred_fallthru
      _
    // Predicated region
    $region46: #{tpu_custom_call.1} parent=1 // pred_check
      _
    $region47: #{tpu_custom_call.1} parent=1 // pred_check_branch
      %47 = sbr.rel (0) target = $region49
    $region48: #{tpu_custom_call.1} parent=1 // pred_region
      _
    $region49: #{tpu_custom_call.1} parent=1 // pred_fallthru
      _
    // Predicated region
    $region50: #{tpu_custom_call.1} parent=1 // pred_check
      _
    $region51: #{tpu_custom_call.1} parent=1 // pred_check_branch
      %49 = sbr.rel (0) target = $region53
    $region52: #{tpu_custom_call.1} parent=1 // pred_region
      _
    $region53: #{tpu_custom_call.1} parent=1 // pred_fallthru
      _
    // Predicated region
    $region54: #{tpu_custom_call.1} parent=1 // pred_check
      _
    $region55: #{tpu_custom_call.1} parent=1 // pred_check_branch
      %51 = sbr.rel (0) target = $region57
    $region56: #{tpu_custom_call.1} parent=1 // pred_region
      _
    $region57: #{tpu_custom_call.1} parent=1 // pred_fallthru
      _
    // Predicated region
    $region58: #{tpu_custom_call.1} parent=1 // pred_check
      _
    $region59: #{tpu_custom_call.1} parent=1 // pred_check_branch
      %53 = sbr.rel (0) target = $region61
    $region60: #{tpu_custom_call.1} parent=1 // pred_region
      _
    $region61: #{tpu_custom_call.1} parent=1 // pred_fallthru
      _
    // Predicated region
    $region62: #{tpu_custom_call.1} parent=1 // pred_check
      _
    $region63: #{tpu_custom_call.1} parent=1 // pred_check_branch
      %55 = sbr.rel (0) target = $region65
    $region64: #{tpu_custom_call.1} parent=1 // pred_region
      _
    $region65: #{tpu_custom_call.1} parent=1 // pred_fallthru
      _
    // Predicated region
    $region66: #{tpu_custom_call.1} parent=1 // pred_check
      _
    $region67: #{tpu_custom_call.1} parent=1 // pred_check_branch
      %57 = sbr.rel (0) target = $region69
    $region68: #{tpu_custom_call.1} parent=1 // pred_region
      _
    $region69: #{tpu_custom_call.1} parent=1 // pred_fallthru
      _
    // Predicated region
    $region70: #{tpu_custom_call.1} parent=1 // pred_check
      _
    $region71: #{tpu_custom_call.1} parent=1 // pred_check_branch
      %59 = sbr.rel (0) target = $region73
    $region72: #{tpu_custom_call.1} parent=1 // pred_region
      _
    $region73: #{tpu_custom_call.1} parent=1 // pred_fallthru
      _
    %v62 = vld [vmem:[%s0] sm:$0xf]
    %v63 = vld [vmem:[%s0 + $0x4] sm:$0xf]
    %v64 = vld [vmem:[%s1] sm:$0xf]
    %v65 = vld [vmem:[%s1 + $0x4] sm:$0xf]
    %v66 = vld [vmem:[%s1 + $0x8] sm:$0xf]
    %v67 = vld [vmem:[%s1 + $0xc] sm:$0xf]
    %v68 = vld [vmem:[%s2] sm:$0x1]
    %v70 = vlaneseq
    %v71 = vshrl.u32 %v70, 7
    %v72 = vsub.s32 0, %v71
    %v73 = vrot.slane %v68, %v72
    %v77 = vunpack.c.l.b16 %v62
    %v78 = vunpack.c.l.b16 %v63
    %v79 = vpack.c.b16 %v78, %v77
    %v84 = vunpack.c.l.b16 %v64
    %v85 = vunpack.c.l.b16 %v65
    %v86 = vunpack.c.l.b16 %v66
    %v87 = vunpack.c.l.b16 %v67
    %v88 = vpack.c.b16 %v85, %v84
    %v89 = vpack.c.b16 %v87, %v86
    %vm92 = vcmask 261120
    %v94 = vsel %vm92, %v79, 0
    %96 = vmatprep.subr.bf16.mxu0 0
    %97 = vmatpush1.bf16.msra.mxu0 %v88
    %98 = vmatprep.subr.bf16.mxu0 0
    %99 = vmatpush1.bf16.msra.mxu0 %v89
    %100 = vmatprep.subr.bf16.mxu0 0
    %101 = vmatpush1.bf16.msra.mxu0 0
    %102 = vmatprep.subr.bf16.mxu0 0
    %103 = vmatpush1.bf16.msra.mxu0 0
    %104 = vmatprep.subr.bf16.mxu0 0
    %105 = vmatpush1.bf16.msra.mxu0 0
    %106 = vmatprep.subr.bf16.mxu0 0
    %107 = vmatpush1.bf16.msra.mxu0 0
    %108 = vmatprep.subr.bf16.mxu0 0
    %109 = vmatpush1.bf16.msra.mxu0 0
    %110 = vmatprep.subr.bf16.mxu0 0
    %111 = vmatpush1.bf16.msra.mxu0 0
    %112 = vmatprep.subr.bf16.mxu0 0
    %113 = vmatpush1.bf16.msra.mxu0 0
    %114 = vmatprep.subr.bf16.mxu0 0
    %115 = vmatpush1.bf16.msra.mxu0 0
    %116 = vmatprep.subr.bf16.mxu0 0
    %117 = vmatpush1.bf16.msra.mxu0 0
    %118 = vmatprep.subr.bf16.mxu0 0
    %119 = vmatpush1.bf16.msra.mxu0 0
    %120 = vmatprep.subr.bf16.mxu0 0
    %121 = vmatpush1.bf16.msra.mxu0 0
    %122 = vmatprep.subr.bf16.mxu0 0
    %123 = vmatpush1.bf16.msra.mxu0 0
    %124 = vmatprep.subr.bf16.mxu0 0
    %125 = vmatpush1.bf16.msra.mxu0 0
    %126 = vmatprep.subr.bf16.mxu0 0
    %127 = vmatpush1.bf16.msra.mxu0 0
    %128 = vmatprep.mubr.bf16.mxu0 0
    %129 = vmatmul.mubr.bf16.gmra.mrb[0].mxu0 %v94
    %v130 = vpop.f32.mrb[0].mxu0
    %v131 = vadd.f32 %v73, %v130
    %v132 = vpop.f32.mrb[0].mxu0
    %v133 = vpop.f32.mrb[0].mxu0
    %v134 = vadd.f32 %v73, %v133
    %v135 = vpop.f32.mrb[0].mxu0
    %136 = vdwg.mxu0
    %v137 = vpack.c.bf16 %v134, %v131
    %vm138 = vcmp.gt.bf16.partialorder %v137, 0
    %v139 = vmul.bf16 %v137, 1009007652
    %v140 = vsel %vm138, %v137, %v139
    %v141 = vld [vmem:[%s3] sm:$0xf]
    %v142 = vld [vmem:[%s3 + $0x4] sm:$0xf]
    %v143 = vld [vmem:[%s3 + $0x8] sm:$0xf]
    %v144 = vld [vmem:[%s3 + $0xc] sm:$0xf]
    %v145 = vld [vmem:[%s4] sm:$0x1]
    %v147 = vlaneseq
    %v148 = vshrl.u32 %v147, 7
    %v149 = vsub.s32 0, %v148
    %v150 = vrot.slane %v145, %v149
    %v156 = vunpack.c.l.b16 %v141
    %v157 = vunpack.c.l.b16 %v142
    %v158 = vunpack.c.l.b16 %v143
    %v159 = vunpack.c.l.b16 %v144
    %v160 = vpack.c.b16 %v157, %v156
    %v161 = vpack.c.b16 %v159, %v158
    %v165 = vsel %vm92, %v140, 0
    %167 = vmatprep.subr.bf16.mxu0 0
    %168 = vmatpush1.bf16.msra.mxu0 %v160
    %169 = vmatprep.subr.bf16.mxu0 0
    %170 = vmatpush1.bf16.msra.mxu0 %v161
    %171 = vmatprep.subr.bf16.mxu0 0
    %172 = vmatpush1.bf16.msra.mxu0 0
    %173 = vmatprep.subr.bf16.mxu0 0
    %174 = vmatpush1.bf16.msra.mxu0 0
    %175 = vmatprep.subr.bf16.mxu0 0
    %176 = vmatpush1.bf16.msra.mxu0 0
    %177 = vmatprep.subr.bf16.mxu0 0
    %178 = vmatpush1.bf16.msra.mxu0 0
    %179 = vmatprep.subr.bf16.mxu0 0
    %180 = vmatpush1.bf16.msra.mxu0 0
    %181 = vmatprep.subr.bf16.mxu0 0
    %182 = vmatpush1.bf16.msra.mxu0 0
    %183 = vmatprep.subr.bf16.mxu0 0
    %184 = vmatpush1.bf16.msra.mxu0 0
    %185 = vmatprep.subr.bf16.mxu0 0
    %186 = vmatpush1.bf16.msra.mxu0 0
    %187 = vmatprep.subr.bf16.mxu0 0
    %188 = vmatpush1.bf16.msra.mxu0 0
    %189 = vmatprep.subr.bf16.mxu0 0
    %190 = vmatpush1.bf16.msra.mxu0 0
    %191 = vmatprep.subr.bf16.mxu0 0
    %192 = vmatpush1.bf16.msra.mxu0 0
    %193 = vmatprep.subr.bf16.mxu0 0
    %194 = vmatpush1.bf16.msra.mxu0 0
    %195 = vmatprep.subr.bf16.mxu0 0
    %196 = vmatpush1.bf16.msra.mxu0 0
    %197 = vmatprep.subr.bf16.mxu0 0
    %198 = vmatpush1.bf16.msra.mxu0 0
    %199 = vmatprep.mubr.bf16.mxu0 0
    %200 = vmatmul.mubr.bf16.gmra.mrb[0].mxu0 %v165
    %v201 = vpop.f32.mrb[0].mxu0
    %v202 = vadd.f32 %v150, %v201
    %v203 = vpop.f32.mrb[0].mxu0
    %v204 = vpop.f32.mrb[0].mxu0
    %v205 = vadd.f32 %v150, %v204
    %v206 = vpop.f32.mrb[0].mxu0
    %207 = vdwg.mxu0
    %v208 = vpack.c.bf16 %v205, %v202
    %v209 = vld [vmem:[%s5] sm:$0xff]
    %v210 = vld [vmem:[%s5 + $0x8] sm:$0xff]
    %v211 = vld [vmem:[%s5 + $0x10] sm:$0xff]
    %v212 = vld [vmem:[%s5 + $0x18] sm:$0xff]
    %v213 = vld [vmem:[%s6] sm:$0x3]
    %v215 = vlaneseq
    %v216 = vshrl.u32 %v215, 7
    %v217 = vsub.s32 0, %v216
    %v218 = vrot.slane %v213, %v217
    %v219 = vlaneseq
    %v220 = vshrl.u32 %v219, 7
    %v221 = vsub.s32 1, %v220
    %v222 = vrot.slane %v213, %v221
    %v229 = vunpack.c.l.b16 %v209
    %v230 = vunpack.c.h.b16 %v209
    %v231 = vunpack.c.l.b16 %v210
    %v232 = vunpack.c.h.b16 %v210
    %v233 = vunpack.c.l.b16 %v211
    %v234 = vunpack.c.h.b16 %v211
    %v235 = vunpack.c.l.b16 %v212
    %v236 = vunpack.c.h.b16 %v212
    %v237 = vpack.c.b16 %v231, %v229
    %v238 = vpack.c.b16 %v232, %v230
    %v239 = vpack.c.b16 %v235, %v233
    %v240 = vpack.c.b16 %v236, %v234
    %v246 = vsel %vm92, %v208, 0
    %248 = vmatprep.subr.bf16.mxu0 %v238
    %249 = vmatpush1.bf16.msra.mxu0 %v237
    %250 = vmatprep.subr.bf16.mxu0 %v240
    %251 = vmatpush1.bf16.msra.mxu0 %v239
    %252 = vmatprep.subr.bf16.mxu0 0
    %253 = vmatpush1.bf16.msra.mxu0 0
    %254 = vmatprep.subr.bf16.mxu0 0
    %255 = vmatpush1.bf16.msra.mxu0 0
    %256 = vmatprep.subr.bf16.mxu0 0
    %257 = vmatpush1.bf16.msra.mxu0 0
    %258 = vmatprep.subr.bf16.mxu0 0
    %259 = vmatpush1.bf16.msra.mxu0 0
    %260 = vmatprep.subr.bf16.mxu0 0
    %261 = vmatpush1.bf16.msra.mxu0 0
    %262 = vmatprep.subr.bf16.mxu0 0
    %263 = vmatpush1.bf16.msra.mxu0 0
    %264 = vmatprep.subr.bf16.mxu0 0
    %265 = vmatpush1.bf16.msra.mxu0 0
    %266 = vmatprep.subr.bf16.mxu0 0
    %267 = vmatpush1.bf16.msra.mxu0 0
    %268 = vmatprep.subr.bf16.mxu0 0
    %269 = vmatpush1.bf16.msra.mxu0 0
    %270 = vmatprep.subr.bf16.mxu0 0
    %271 = vmatpush1.bf16.msra.mxu0 0
    %272 = vmatprep.subr.bf16.mxu0 0
    %273 = vmatpush1.bf16.msra.mxu0 0
    %274 = vmatprep.subr.bf16.mxu0 0
    %275 = vmatpush1.bf16.msra.mxu0 0
    %276 = vmatprep.subr.bf16.mxu0 0
    %277 = vmatpush1.bf16.msra.mxu0 0
    %278 = vmatprep.subr.bf16.mxu0 0
    %279 = vmatpush1.bf16.msra.mxu0 0
    %280 = vmatprep.mubr.bf16.mxu0 0
    %281 = vmatmul.mubr.bf16.gmra.mrb[0].mxu0 %v246
    %v282 = vpop.f32.mrb[0].mxu0
    %v283 = vadd.f32 %v218, %v282
    %v284 = vpop.f32.mrb[0].mxu0
    %v285 = vadd.f32 %v222, %v284
    %v286 = vpop.f32.mrb[0].mxu0
    %v287 = vadd.f32 %v218, %v286
    %v288 = vpop.f32.mrb[0].mxu0
    %v289 = vadd.f32 %v222, %v288
    %290 = vdwg.mxu0
    %v291 = vpack.c.bf16 %v287, %v283
    %v292 = vpack.c.bf16 %v289, %v285
    %v293 = vmax.bf16 %v291, 0
    %v294 = vld [vmem:[%s7] sm:$0xf]
    %v295 = vld [vmem:[%s7 + $0x4] sm:$0xf]
    %v296 = vld [vmem:[%s7 + $0x8] sm:$0xf]
    %v297 = vld [vmem:[%s7 + $0xc] sm:$0xf]
    %v298 = vld [vmem:[%s7 + $0x10] sm:$0xf]
    %v299 = vld [vmem:[%s7 + $0x14] sm:$0xf]
    %v300 = vld [vmem:[%s7 + $0x18] sm:$0xf]
    %v301 = vld [vmem:[%s7 + $0x1c] sm:$0xf]
    %v302 = vld [vmem:[%s7 + $0x20] sm:$0xf]
    %v303 = vld [vmem:[%s7 + $0x24] sm:$0xf]
    %v304 = vld [vmem:[%s7 + $0x28] sm:$0xf]
    %v305 = vld [vmem:[%s7 + $0x2c] sm:$0xf]
    %v306 = vld [vmem:[%s7 + $0x30] sm:$0xf]
    %v307 = vld [vmem:[%s7 + $0x34] sm:$0xf]
    %v308 = vld [vmem:[%s7 + $0x38] sm:$0xf]
    %v309 = vld [vmem:[%s7 + $0x3c] sm:$0xf]
    %v310 = vld [vmem:[%s8] sm:$0x1]
    %v312 = vlaneseq
    %v313 = vshrl.u32 %v312, 7
    %v314 = vsub.s32 0, %v313
    %v315 = vrot.slane %v310, %v314
    %v333 = vunpack.c.l.b16 %v294
    %v334 = vunpack.c.l.b16 %v295
    %v335 = vunpack.c.l.b16 %v296
    %v336 = vunpack.c.l.b16 %v297
    %v337 = vunpack.c.l.b16 %v298
    %v338 = vunpack.c.l.b16 %v299
    %v339 = vunpack.c.l.b16 %v300
    %v340 = vunpack.c.l.b16 %v301
    %v341 = vunpack.c.l.b16 %v302
    %v342 = vunpack.c.l.b16 %v303
    %v343 = vunpack.c.l.b16 %v304
    %v344 = vunpack.c.l.b16 %v305
    %v345 = vunpack.c.l.b16 %v306
    %v346 = vunpack.c.l.b16 %v307
    %v347 = vunpack.c.l.b16 %v308
    %v348 = vunpack.c.l.b16 %v309
    %v349 = vpack.c.b16 %v334, %v333
    %v350 = vpack.c.b16 %v336, %v335
    %v351 = vpack.c.b16 %v338, %v337
    %v352 = vpack.c.b16 %v340, %v339
    %v353 = vpack.c.b16 %v342, %v341
    %v354 = vpack.c.b16 %v344, %v343
    %v355 = vpack.c.b16 %v346, %v345
    %v356 = vpack.c.b16 %v348, %v347
    %365 = vmatprep.subr.bf16.mxu0 0
    %366 = vmatpush1.bf16.msra.mxu0 %v349
    %367 = vmatprep.subr.bf16.mxu0 0
    %368 = vmatpush1.bf16.msra.mxu0 %v350
    %369 = vmatprep.subr.bf16.mxu0 0
    %370 = vmatpush1.bf16.msra.mxu0 %v351
    %371 = vmatprep.subr.bf16.mxu0 0
    %372 = vmatpush1.bf16.msra.mxu0 %v352
    %373 = vmatprep.subr.bf16.mxu0 0
    %374 = vmatpush1.bf16.msra.mxu0 %v353
    %375 = vmatprep.subr.bf16.mxu0 0
    %376 = vmatpush1.bf16.msra.mxu0 %v354
    %377 = vmatprep.subr.bf16.mxu0 0
    %378 = vmatpush1.bf16.msra.mxu0 %v355
    %379 = vmatprep.subr.bf16.mxu0 0
    %380 = vmatpush1.bf16.msra.mxu0 %v356
    %381 = vmatprep.subr.bf16.mxu0 0
    %382 = vmatpush1.bf16.msra.mxu0 0
    %383 = vmatprep.subr.bf16.mxu0 0
    %384 = vmatpush1.bf16.msra.mxu0 0
    %385 = vmatprep.subr.bf16.mxu0 0
    %386 = vmatpush1.bf16.msra.mxu0 0
    %387 = vmatprep.subr.bf16.mxu0 0
    %388 = vmatpush1.bf16.msra.mxu0 0
    %389 = vmatprep.subr.bf16.mxu0 0
    %390 = vmatpush1.bf16.msra.mxu0 0
    %391 = vmatprep.subr.bf16.mxu0 0
    %392 = vmatpush1.bf16.msra.mxu0 0
    %393 = vmatprep.subr.bf16.mxu0 0
    %394 = vmatpush1.bf16.msra.mxu0 0
    %395 = vmatprep.subr.bf16.mxu0 0
    %396 = vmatpush1.bf16.msra.mxu0 0
    %397 = vmatprep.mubr.bf16.mxu0 0
    %398 = vmatmul.mubr.bf16.gmra.mrb[0].mxu0 %v293
    %v399 = vpop.f32.mrb[0].mxu0
    %v400 = vadd.f32 %v315, %v399
    %v401 = vpop.f32.mrb[0].mxu0
    %v402 = vpop.f32.mrb[0].mxu0
    %v403 = vadd.f32 %v315, %v402
    %v404 = vpop.f32.mrb[0].mxu0
    %405 = vdwg.mxu0
    %v406 = vpack.c.bf16 %v403, %v400
    %v407 = vmax.bf16 %v406, 0
    %v408 = vld [vmem:[%s9] sm:$0xf]
    %v409 = vld [vmem:[%s9 + $0x4] sm:$0xf]
    %v410 = vld [vmem:[%s9 + $0x8] sm:$0xf]
    %v411 = vld [vmem:[%s9 + $0xc] sm:$0xf]
    %v412 = vld [vmem:[%s10] sm:$0x1]
    %v414 = vlaneseq
    %v415 = vshrl.u32 %v414, 7
    %v416 = vsub.s32 0, %v415
    %v417 = vrot.slane %v412, %v416
    %v423 = vunpack.c.l.b16 %v408
    %v424 = vunpack.c.l.b16 %v409
    %v425 = vunpack.c.l.b16 %v410
    %v426 = vunpack.c.l.b16 %v411
    %v427 = vpack.c.b16 %v424, %v423
    %v428 = vpack.c.b16 %v426, %v425
    %v432 = vsel %vm92, %v407, 0
    %434 = vmatprep.subr.bf16.mxu0 0
    %435 = vmatpush1.bf16.msra.mxu0 %v427
    %436 = vmatprep.subr.bf16.mxu0 0
    %437 = vmatpush1.bf16.msra.mxu0 %v428
    %438 = vmatprep.subr.bf16.mxu0 0
    %439 = vmatpush1.bf16.msra.mxu0 0
    %440 = vmatprep.subr.bf16.mxu0 0
    %441 = vmatpush1.bf16.msra.mxu0 0
    %442 = vmatprep.subr.bf16.mxu0 0
    %443 = vmatpush1.bf16.msra.mxu0 0
    %444 = vmatprep.subr.bf16.mxu0 0
    %445 = vmatpush1.bf16.msra.mxu0 0
    %446 = vmatprep.subr.bf16.mxu0 0
    %447 = vmatpush1.bf16.msra.mxu0 0
    %448 = vmatprep.subr.bf16.mxu0 0
    %449 = vmatpush1.bf16.msra.mxu0 0
    %450 = vmatprep.subr.bf16.mxu0 0
    %451 = vmatpush1.bf16.msra.mxu0 0
    %452 = vmatprep.subr.bf16.mxu0 0
    %453 = vmatpush1.bf16.msra.mxu0 0
    %454 = vmatprep.subr.bf16.mxu0 0
    %455 = vmatpush1.bf16.msra.mxu0 0
    %456 = vmatprep.subr.bf16.mxu0 0
    %457 = vmatpush1.bf16.msra.mxu0 0
    %458 = vmatprep.subr.bf16.mxu0 0
    %459 = vmatpush1.bf16.msra.mxu0 0
    %460 = vmatprep.subr.bf16.mxu0 0
    %461 = vmatpush1.bf16.msra.mxu0 0
    %462 = vmatprep.subr.bf16.mxu0 0
    %463 = vmatpush1.bf16.msra.mxu0 0
    %464 = vmatprep.subr.bf16.mxu0 0
    %465 = vmatpush1.bf16.msra.mxu0 0
    %466 = vmatprep.mubr.bf16.mxu0 0
    %467 = vmatmul.mubr.bf16.gmra.mrb[0].mxu0 %v432
    %v468 = vpop.f32.mrb[0].mxu0
    %v469 = vadd.f32 %v417, %v468
    %v470 = vpop.f32.mrb[0].mxu0
    %v471 = vpop.f32.mrb[0].mxu0
    %v472 = vadd.f32 %v417, %v471
    %v473 = vpop.f32.mrb[0].mxu0
    %474 = vdwg.mxu0
    %v475 = vpack.c.bf16 %v472, %v469
    %v476 = vmax.bf16 %v475, 0
    %v477 = vadd.bf16 %v476, %v292
    %v478 = vld [vmem:[%s11] sm:$0xff]
    %v479 = vld [vmem:[%s11 + $0x8] sm:$0xff]
    %v480 = vld [vmem:[%s11 + $0x10] sm:$0xff]
    %v481 = vld [vmem:[%s11 + $0x18] sm:$0xff]
    %v482 = vld [vmem:[%s12] sm:$0x3]
    %v484 = vlaneseq
    %v485 = vshrl.u32 %v484, 7
    %v486 = vsub.s32 0, %v485
    %v487 = vrot.slane %v482, %v486
    %v488 = vlaneseq
    %v489 = vshrl.u32 %v488, 7
    %v490 = vsub.s32 1, %v489
    %v491 = vrot.slane %v482, %v490
    %v498 = vunpack.c.l.b16 %v478
    %v499 = vunpack.c.h.b16 %v478
    %v500 = vunpack.c.l.b16 %v479
    %v501 = vunpack.c.h.b16 %v479
    %v502 = vunpack.c.l.b16 %v480
    %v503 = vunpack.c.h.b16 %v480
    %v504 = vunpack.c.l.b16 %v481
    %v505 = vunpack.c.h.b16 %v481
    %v506 = vpack.c.b16 %v500, %v498
    %v507 = vpack.c.b16 %v501, %v499
    %v508 = vpack.c.b16 %v504, %v502
    %v509 = vpack.c.b16 %v505, %v503
    %v515 = vsel %vm92, %v477, 0
    %517 = vmatprep.subr.bf16.mxu0 %v507
    %518 = vmatpush1.bf16.msra.mxu0 %v506
    %519 = vmatprep.subr.bf16.mxu0 %v509
    %520 = vmatpush1.bf16.msra.mxu0 %v508
    %521 = vmatprep.subr.bf16.mxu0 0
    %522 = vmatpush1.bf16.msra.mxu0 0
    %523 = vmatprep.subr.bf16.mxu0 0
    %524 = vmatpush1.bf16.msra.mxu0 0
    %525 = vmatprep.subr.bf16.mxu0 0
    %526 = vmatpush1.bf16.msra.mxu0 0
    %527 = vmatprep.subr.bf16.mxu0 0
    %528 = vmatpush1.bf16.msra.mxu0 0
    %529 = vmatprep.subr.bf16.mxu0 0
    %530 = vmatpush1.bf16.msra.mxu0 0
    %531 = vmatprep.subr.bf16.mxu0 0
    %532 = vmatpush1.bf16.msra.mxu0 0
    %533 = vmatprep.subr.bf16.mxu0 0
    %534 = vmatpush1.bf16.msra.mxu0 0
    %535 = vmatprep.subr.bf16.mxu0 0
    %536 = vmatpush1.bf16.msra.mxu0 0
    %537 = vmatprep.subr.bf16.mxu0 0
    %538 = vmatpush1.bf16.msra.mxu0 0
    %539 = vmatprep.subr.bf16.mxu0 0
    %540 = vmatpush1.bf16.msra.mxu0 0
    %541 = vmatprep.subr.bf16.mxu0 0
    %542 = vmatpush1.bf16.msra.mxu0 0
    %543 = vmatprep.subr.bf16.mxu0 0
    %544 = vmatpush1.bf16.msra.mxu0 0
    %545 = vmatprep.subr.bf16.mxu0 0
    %546 = vmatpush1.bf16.msra.mxu0 0
    %547 = vmatprep.subr.bf16.mxu0 0
    %548 = vmatpush1.bf16.msra.mxu0 0
    %549 = vmatprep.mubr.bf16.mxu0 0
    %550 = vmatmul.mubr.bf16.gmra.mrb[0].mxu0 %v515
    %v551 = vpop.f32.mrb[0].mxu0
    %v552 = vadd.f32 %v487, %v551
    %v553 = vpop.f32.mrb[0].mxu0
    %v554 = vadd.f32 %v491, %v553
    %v555 = vpop.f32.mrb[0].mxu0
    %v556 = vadd.f32 %v487, %v555
    %v557 = vpop.f32.mrb[0].mxu0
    %v558 = vadd.f32 %v491, %v557
    %559 = vdwg.mxu0
    %v560 = vpack.c.bf16 %v556, %v552
    %v561 = vpack.c.bf16 %v558, %v554
    %vm562 = vcmp.gt.bf16.partialorder %v560, 0
    %v563 = vmul.bf16 %v560, 1009007652
    %v564 = vsel %vm562, %v560, %v563
    %v565 = vld [vmem:[%s13] sm:$0xf]
    %v566 = vld [vmem:[%s13 + $0x4] sm:$0xf]
    %v567 = vld [vmem:[%s13 + $0x8] sm:$0xf]
    %v568 = vld [vmem:[%s13 + $0xc] sm:$0xf]
    %v569 = vld [vmem:[%s13 + $0x10] sm:$0xf]
    %v570 = vld [vmem:[%s13 + $0x14] sm:$0xf]
    %v571 = vld [vmem:[%s13 + $0x18] sm:$0xf]
    %v572 = vld [vmem:[%s13 + $0x1c] sm:$0xf]
    %v573 = vld [vmem:[%s13 + $0x20] sm:$0xf]
    %v574 = vld [vmem:[%s13 + $0x24] sm:$0xf]
    %v575 = vld [vmem:[%s13 + $0x28] sm:$0xf]
    %v576 = vld [vmem:[%s13 + $0x2c] sm:$0xf]
    %v577 = vld [vmem:[%s13 + $0x30] sm:$0xf]
    %v578 = vld [vmem:[%s13 + $0x34] sm:$0xf]
    %v579 = vld [vmem:[%s13 + $0x38] sm:$0xf]
    %v580 = vld [vmem:[%s13 + $0x3c] sm:$0xf]
    %v581 = vld [vmem:[%s14] sm:$0x1]
    %v583 = vlaneseq
    %v584 = vshrl.u32 %v583, 7
    %v585 = vsub.s32 0, %v584
    %v586 = vrot.slane %v581, %v585
    %v604 = vunpack.c.l.b16 %v565
    %v605 = vunpack.c.l.b16 %v566
    %v606 = vunpack.c.l.b16 %v567
    %v607 = vunpack.c.l.b16 %v568
    %v608 = vunpack.c.l.b16 %v569
    %v609 = vunpack.c.l.b16 %v570
    %v610 = vunpack.c.l.b16 %v571
    %v611 = vunpack.c.l.b16 %v572
    %v612 = vunpack.c.l.b16 %v573
    %v613 = vunpack.c.l.b16 %v574
    %v614 = vunpack.c.l.b16 %v575
    %v615 = vunpack.c.l.b16 %v576
    %v616 = vunpack.c.l.b16 %v577
    %v617 = vunpack.c.l.b16 %v578
    %v618 = vunpack.c.l.b16 %v579
    %v619 = vunpack.c.l.b16 %v580
    %v620 = vpack.c.b16 %v605, %v604
    %v621 = vpack.c.b16 %v607, %v606
    %v622 = vpack.c.b16 %v609, %v608
    %v623 = vpack.c.b16 %v611, %v610
    %v624 = vpack.c.b16 %v613, %v612
    %v625 = vpack.c.b16 %v615, %v614
    %v626 = vpack.c.b16 %v617, %v616
    %v627 = vpack.c.b16 %v619, %v618
    %636 = vmatprep.subr.bf16.mxu0 0
    %637 = vmatpush1.bf16.msra.mxu0 %v620
    %638 = vmatprep.subr.bf16.mxu0 0
    %639 = vmatpush1.bf16.msra.mxu0 %v621
    %640 = vmatprep.subr.bf16.mxu0 0
    %641 = vmatpush1.bf16.msra.mxu0 %v622
    %642 = vmatprep.subr.bf16.mxu0 0
    %643 = vmatpush1.bf16.msra.mxu0 %v623
    %644 = vmatprep.subr.bf16.mxu0 0
    %645 = vmatpush1.bf16.msra.mxu0 %v624
    %646 = vmatprep.subr.bf16.mxu0 0
    %647 = vmatpush1.bf16.msra.mxu0 %v625
    %648 = vmatprep.subr.bf16.mxu0 0
    %649 = vmatpush1.bf16.msra.mxu0 %v626
    %650 = vmatprep.subr.bf16.mxu0 0
    %651 = vmatpush1.bf16.msra.mxu0 %v627
    %652 = vmatprep.subr.bf16.mxu0 0
    %653 = vmatpush1.bf16.msra.mxu0 0
    %654 = vmatprep.subr.bf16.mxu0 0
    %655 = vmatpush1.bf16.msra.mxu0 0
    %656 = vmatprep.subr.bf16.mxu0 0
    %657 = vmatpush1.bf16.msra.mxu0 0
    %658 = vmatprep.subr.bf16.mxu0 0
    %659 = vmatpush1.bf16.msra.mxu0 0
    %660 = vmatprep.subr.bf16.mxu0 0
    %661 = vmatpush1.bf16.msra.mxu0 0
    %662 = vmatprep.subr.bf16.mxu0 0
    %663 = vmatpush1.bf16.msra.mxu0 0
    %664 = vmatprep.subr.bf16.mxu0 0
    %665 = vmatpush1.bf16.msra.mxu0 0
    %666 = vmatprep.subr.bf16.mxu0 0
    %667 = vmatpush1.bf16.msra.mxu0 0
    %668 = vmatprep.mubr.bf16.mxu0 0
    %669 = vmatmul.mubr.bf16.gmra.mrb[0].mxu0 %v564
    %v670 = vpop.f32.mrb[0].mxu0
    %v671 = vadd.f32 %v586, %v670
    %v672 = vpop.f32.mrb[0].mxu0
    %v673 = vpop.f32.mrb[0].mxu0
    %v674 = vadd.f32 %v586, %v673
    %v675 = vpop.f32.mrb[0].mxu0
    %676 = vdwg.mxu0
    %v677 = vpack.c.bf16 %v674, %v671
    %vm678 = vcmp.gt.bf16.partialorder %v677, 0
    %v679 = vmul.bf16 %v677, 1009007652
    %v680 = vsel %vm678, %v677, %v679
    %v681 = vadd.bf16 %v680, %v561
    %v682 = vld [vmem:[%s15] sm:$0xff]
    %v683 = vld [vmem:[%s15 + $0x8] sm:$0x33]
    %v686 = vunpack.c.l.b16 %v682
    %v687 = vunpack.c.h.b16 %v682
    %v688 = vunpack.c.l.b16 %v683
    %v689 = vunpack.c.h.b16 %v683
    %v690 = vpack.c.b16 %v688, %v686
    %v691 = vpack.c.b16 %v689, %v687
    %vm692 = vcmask 97280
    %v694 = vsel %vm692, %v681, 0
    %vm696 = vcmask 1045504
    %v698 = vsel %vm696, %v690, 0
    %v701 = vsel %vm696, %v691, 0
    %703 = vmatprep.subr.bf16.mxu0 %v701
    %704 = vmatpush1.bf16.msra.mxu0 %v698
    %705 = vmatprep.subr.bf16.mxu0 0
    %706 = vmatpush1.bf16.msra.mxu0 0
    %707 = vmatprep.subr.bf16.mxu0 0
    %708 = vmatpush1.bf16.msra.mxu0 0
    %709 = vmatprep.subr.bf16.mxu0 0
    %710 = vmatpush1.bf16.msra.mxu0 0
    %711 = vmatprep.subr.bf16.mxu0 0
    %712 = vmatpush1.bf16.msra.mxu0 0
    %713 = vmatprep.subr.bf16.mxu0 0
    %714 = vmatpush1.bf16.msra.mxu0 0
    %715 = vmatprep.subr.bf16.mxu0 0
    %716 = vmatpush1.bf16.msra.mxu0 0
    %717 = vmatprep.subr.bf16.mxu0 0
    %718 = vmatpush1.bf16.msra.mxu0 0
    %719 = vmatprep.subr.bf16.mxu0 0
    %720 = vmatpush1.bf16.msra.mxu0 0
    %721 = vmatprep.subr.bf16.mxu0 0
    %722 = vmatpush1.bf16.msra.mxu0 0
    %723 = vmatprep.subr.bf16.mxu0 0
    %724 = vmatpush1.bf16.msra.mxu0 0
    %725 = vmatprep.subr.bf16.mxu0 0
    %726 = vmatpush1.bf16.msra.mxu0 0
    %727 = vmatprep.subr.bf16.mxu0 0
    %728 = vmatpush1.bf16.msra.mxu0 0
    %729 = vmatprep.subr.bf16.mxu0 0
    %730 = vmatpush1.bf16.msra.mxu0 0
    %731 = vmatprep.subr.bf16.mxu0 0
    %732 = vmatpush1.bf16.msra.mxu0 0
    %733 = vmatprep.subr.bf16.mxu0 0
    %734 = vmatpush1.bf16.msra.mxu0 0
    %735 = vmatprep.mubr.bf16.mxu0 0
    %736 = vmatmul.mubr.bf16.gmra.mrb[0].mxu0 %v694
    %v737 = vpop.f32.mrb[0].mxu0
    %v738 = vadd.f32 0.0, %v737
    %v739 = vpop.f32.mrb[0].mxu0
    %v740 = vadd.f32 0.0, %v739
    %v741 = vpop.f32.mrb[0].mxu0
    %v742 = vadd.f32 0.0, %v741
    %v743 = vpop.f32.mrb[0].mxu0
    %v744 = vadd.f32 0.0, %v743
    %745 = vdwg.mxu0
    %v746 = vunpack.c.l.bf16 %v681
    %v747 = vunpack.c.h.bf16 %v681
    %v748 = vmul.f32 %v746, %v746
    %v749 = vmul.f32 %v747, %v747
    %v750 = vsel %vm692, %v748, 0.0
    %751 = vadd.xlane.f32.xlu0 %v750
    %v752 = vpop.xlane.xlu0 %751
    %v753 = vsel %vm692, %v749, 0.0
    %754 = vadd.xlane.f32.xlu0 %v753
    %v755 = vpop.xlane.xlu0 %754
    %v756 = vmul.f32 %v738, 2.0
    %v757 = vmul.f32 %v742, 2.0
    %v758 = vsub.f32 %v752, %v756
    %v759 = vsub.f32 %v755, %v757
    %v760 = vld [vmem:[%s16] sm:$0x1]
    %v762 = vlaneseq
    %v763 = vshrl.u32 %v762, 7
    %v764 = vsub.s32 0, %v763
    %v765 = vrot.slane %v760, %v764
    %v767 = vadd.f32 %v758, %v765
    %v768 = vadd.f32 %v759, %v765
    %v769 = vmax.f32 %v767, 0.0
    %v770 = vmax.f32 %v768, 0.0
    %v771 = vadd.f32 %v769, 1.0
    %v772 = vadd.f32 %v770, 1.0
    %v773 = vrcp.pop %v771
    %v774 = vmul.f32 1.0, %v773
    %v775 = vrcp.pop %v772
    %v776 = vmul.f32 1.0, %v775
    %vm777 = vcmask 23552
    %v778 = vsel %vm777, %v774, 0.0
    %779 = vadd.xlane.f32.xlu0 %v778
    %v780 = vpop.xlane.xlu0 %779
    %v781 = vsel %vm777, %v776, 0.0
    %782 = vadd.xlane.f32.xlu0 %v781
    %v783 = vpop.xlane.xlu0 %782
    %v784 = vrcp.pop %v780
    %v785 = vmul.f32 %v774, %v784
    %v786 = vrcp.pop %v783
    %v787 = vmul.f32 %v776, %v786
    %v788 = vmul.f32 %v740, %v740
    %v789 = vmul.f32 %v744, %v744
    %v790 = vld [vmem:[%s17] sm:$0xf]
    %v791 = vld [vmem:[%s17 + $0x4] sm:$0x3]
    %v792 = vpack.c.bf16 %v789, %v788
    %v795 = vunpack.c.l.b16 %v790
    %v796 = vunpack.c.l.b16 %v791
    %v797 = vpack.c.b16 %v796, %v795
    %v799 = vsel %vm692, %v792, 0
    %v802 = vsel %vm696, %v797, 0
    %804 = vmatprep.subr.bf16.mxu0 0
    %805 = vmatpush1.bf16.msra.mxu0 %v802
    %806 = vmatprep.subr.bf16.mxu0 0
    %807 = vmatpush1.bf16.msra.mxu0 0
    %808 = vmatprep.subr.bf16.mxu0 0
    %809 = vmatpush1.bf16.msra.mxu0 0
    %810 = vmatprep.subr.bf16.mxu0 0
    %811 = vmatpush1.bf16.msra.mxu0 0
    %812 = vmatprep.subr.bf16.mxu0 0
    %813 = vmatpush1.bf16.msra.mxu0 0
    %814 = vmatprep.subr.bf16.mxu0 0
    %815 = vmatpush1.bf16.msra.mxu0 0
    %816 = vmatprep.subr.bf16.mxu0 0
    %817 = vmatpush1.bf16.msra.mxu0 0
    %818 = vmatprep.subr.bf16.mxu0 0
    %819 = vmatpush1.bf16.msra.mxu0 0
    %820 = vmatprep.subr.bf16.mxu0 0
    %821 = vmatpush1.bf16.msra.mxu0 0
    %822 = vmatprep.subr.bf16.mxu0 0
    %823 = vmatpush1.bf16.msra.mxu0 0
    %824 = vmatprep.subr.bf16.mxu0 0
    %825 = vmatpush1.bf16.msra.mxu0 0
    %826 = vmatprep.subr.bf16.mxu0 0
    %827 = vmatpush1.bf16.msra.mxu0 0
    %828 = vmatprep.subr.bf16.mxu0 0
    %829 = vmatpush1.bf16.msra.mxu0 0
    %830 = vmatprep.subr.bf16.mxu0 0
    %831 = vmatpush1.bf16.msra.mxu0 0
    %832 = vmatprep.subr.bf16.mxu0 0
    %833 = vmatpush1.bf16.msra.mxu0 0
    %834 = vmatprep.subr.bf16.mxu0 0
    %835 = vmatpush1.bf16.msra.mxu0 0
    %836 = vmatprep.mubr.bf16.mxu0 0
    %837 = vmatmul.mubr.bf16.gmra.mrb[0].mxu0 %v799
    %v838 = vpop.f32.mrb[0].mxu0
    %v839 = vadd.f32 4.0, %v838
    %v840 = vpop.f32.mrb[0].mxu0
    %v841 = vpop.f32.mrb[0].mxu0
    %v842 = vadd.f32 4.0, %v841
    %v843 = vpop.f32.mrb[0].mxu0
    %844 = vdwg.mxu0
    %v845 = vmul.f32 %v839, 0.125
    %v846 = vmul.f32 %v842, 0.125
    %v847 = vsel %vm777, %v845, 0.0
    %848 = vadd.xlane.f32.xlu0 %v847
    %v849 = vpop.xlane.xlu0 %848
    %v850 = vsel %vm777, %v846, 0.0
    %851 = vadd.xlane.f32.xlu0 %v850
    %v852 = vpop.xlane.xlu0 %851
    %v853 = vrcp.pop %v849
    %v854 = vmul.f32 %v845, %v853
    %v855 = vrcp.pop %v852
    %v856 = vmul.f32 %v846, %v855
    %v857 = vunpack.c.l.bf16 %v477
    %v858 = vunpack.c.h.bf16 %v477
    %861 = vrot.lane.b32.xlu0 %v746, 32
    %v862 = vpop.permute.xlu0 %861
    %863 = vrot.lane.b32.xlu0 %v747, 32
    %v864 = vpop.permute.xlu0 %863
    %869 = vrot.lane.b32.xlu0 %v785, 44
    %v870 = vpop.permute.xlu0 %869
    %871 = vrot.lane.b32.xlu0 %v787, 44
    %v872 = vpop.permute.xlu0 %871
    %877 = vrot.lane.b32.xlu0 %v854, 47
    %v878 = vpop.permute.xlu0 %877
    %879 = vrot.lane.b32.xlu0 %v856, 47
    %v880 = vpop.permute.xlu0 %879
    %v883 = vsel %vm92, %v857, %v862
    %v884 = vsel %vm92, %v858, %v864
    %vm885 = vcmask 359424
    %v886 = vsel %vm885, %v883, %v870
    %v887 = vsel %vm885, %v884, %v872
    %vm888 = vcmask 384000
    %v889 = vsel %vm888, %v886, %v878
    %v890 = vsel %vm888, %v887, %v880
    %vm891 = vcmask 408576
    %v892 = vsel %vm891, %v889, 0.0
    %v893 = vsel %vm891, %v890, 0.0
    %894 = vst [vmem:[#allocation2] sm:$0xff] %v892
    %895 = vst [vmem:[#allocation2 + $0x8] sm:$0xff] %v893
    // Predicated region
    $region74: #{tpu_custom_call.1} parent=1 // pred_check
      _
    $region75: #{tpu_custom_call.1} parent=1 // pred_check_branch
      %897 = sbr.rel (0) target = $region77
    $region76: #{tpu_custom_call.1} parent=1 // pred_region
      %s899 = ssub.s32 256, 256
      %900 = vsyncadd [#allocation3], %s899
      %s901 = sshll.u32 [#allocation2], 4
      %s902 = int_to_ptr.vmem [resolvable:$true] %s901
      %907 = dma.vmem_to_hbm [thread:$0]  %s902, 256, %s18, [#allocation3], 128, 128, 8
    $region77: #{tpu_custom_call.1} parent=1 // pred_fallthru
      _
    // Predicated region
    $region78: #{tpu_custom_call.1} parent=1 // pred_check
      _
    $region79: #{tpu_custom_call.1} parent=1 // pred_check_branch
      %909 = sbr.rel (0) target = $region81
    $region80: #{tpu_custom_call.1} parent=1 // pred_region
      %910 = dma.done [#allocation3], 256
    $region81: #{tpu_custom_call.1} parent=1 // pred_fallthru
      _
    %911 = vsyncpa [#allocation3], 1

// kernel: tpu_custom_call.1
$region0: #{tpu_custom_call.1}
  #allocation0 [shape = 'u32[]', space=smem, size = 0x4, offset = 0x4, fixed_abs, tag = 'smem constant byte address 0x4 - core index']
  #allocation1 [shape = 'u32[144,128]{1,0:T(1,128)}', space=vmem, size = 0x12000, scoped, tag = 'internal scratch']
  %s0 = inlined_call_operand.vmem [shape: bf16[16,32], index: 0, kind: input, shape index: {}]
  %s1 = inlined_call_operand.vmem [shape: bf16[32,32], index: 1, kind: input, shape index: {}]
  %s2 = inlined_call_operand.vmem [shape: f32[1,32], index: 2, kind: input, shape index: {}]
  %s3 = inlined_call_operand.vmem [shape: bf16[32,32], index: 3, kind: input, shape index: {}]
  %s4 = inlined_call_operand.vmem [shape: f32[1,32], index: 4, kind: input, shape index: {}]
  %s5 = inlined_call_operand.vmem [shape: bf16[32,160], index: 5, kind: input, shape index: {}]
  %s6 = inlined_call_operand.vmem [shape: f32[1,160], index: 6, kind: input, shape index: {}]
  %s7 = inlined_call_operand.vmem [shape: bf16[128,32], index: 7, kind: input, shape index: {}]
  %s8 = inlined_call_operand.vmem [shape: f32[1,32], index: 8, kind: input, shape index: {}]
  %s9 = inlined_call_operand.vmem [shape: bf16[32,32], index: 9, kind: input, shape index: {}]
  %s10 = inlined_call_operand.vmem [shape: f32[1,32], index: 10, kind: input, shape index: {}]
  %s11 = inlined_call_operand.vmem [shape: bf16[32,140], index: 11, kind: input, shape index: {}]
  %s12 = inlined_call_operand.vmem [shape: f32[1,140], index: 12, kind: input, shape index: {}]
  %s13 = inlined_call_operand.vmem [shape: bf16[128,12], index: 13, kind: input, shape index: {}]
  %s14 = inlined_call_operand.vmem [shape: f32[1,12], index: 14, kind: input, shape index: {}]
  %s15 = inlined_call_operand.vmem [shape: bf16[12,140], index: 15, kind: input, shape index: {}]
  %s16 = inlined_call_operand.vmem [shape: f32[1,3], index: 16, kind: input, shape index: {}]
  %s17 = inlined_call_operand.vmem [shape: bf16[12,3], index: 17, kind: input, shape index: {}]
  %s18 = inlined_call_operand.hbm [shape: f32[16,128], index: 18, kind: output, shape index: {}]
  %s19 = sld [smem:[#allocation0]]
  $region82: #{tpu_custom_call.1} parent=0
    _
  %s21 = ssub.s32 1, %s19
  %s22 = scalar_select 0, %s21, %s19
  $region1: #{tpu_custom_call.1} parent=0
    #allocation2 [shape = 'u8[8192]{0}', space=vmem, size = 0x2000, scoped, tag = 'output window, operand 0, single buffered']
    #allocation3 [shape = 's32[1]{0}', space=sflag, size = 0x4, scoped, tag = 'scoped memory for tpu_custom_call.1']
    %23 = vsyncpa [#allocation3], 0
    // Predicated region
    $region2: #{tpu_custom_call.1} parent=1 // pred_check
      _
    $region3: #{tpu_custom_call.1} parent=1 // pred_check_branch
      %25 = sbr.rel (0) target = $region5
    $region4: #{tpu_custom_call.1} parent=1 // pred_region
      _
    $region5: #{tpu_custom_call.1} parent=1 // pred_fallthru
      _
    // Predicated region
    $region6: #{tpu_custom_call.1} parent=1 // pred_check
      _
    $region7: #{tpu_custom_call.1} parent=1 // pred_check_branch
      %27 = sbr.rel (0) target = $region9
    $region8: #{tpu_custom_call.1} parent=1 // pred_region
      _
    $region9: #{tpu_custom_call.1} parent=1 // pred_fallthru
      _
    // Predicated region
    $region10: #{tpu_custom_call.1} parent=1 // pred_check
      _
    $region11: #{tpu_custom_call.1} parent=1 // pred_check_branch
      %29 = sbr.rel (0) target = $region13
    $region12: #{tpu_custom_call.1} parent=1 // pred_region
      _
    $region13: #{tpu_custom_call.1} parent=1 // pred_fallthru
      _
    // Predicated region
    $region14: #{tpu_custom_call.1} parent=1 // pred_check
      _
    $region15: #{tpu_custom_call.1} parent=1 // pred_check_branch
      %31 = sbr.rel (0) target = $region17
    $region16: #{tpu_custom_call.1} parent=1 // pred_region
      _
    $region17: #{tpu_custom_call.1} parent=1 // pred_fallthru
      _
    // Predicated region
    $region18: #{tpu_custom_call.1} parent=1 // pred_check
      _
    $region19: #{tpu_custom_call.1} parent=1 // pred_check_branch
      %33 = sbr.rel (0) target = $region21
    $region20: #{tpu_custom_call.1} parent=1 // pred_region
      _
    $region21: #{tpu_custom_call.1} parent=1 // pred_fallthru
      _
    // Predicated region
    $region22: #{tpu_custom_call.1} parent=1 // pred_check
      _
    $region23: #{tpu_custom_call.1} parent=1 // pred_check_branch
      %35 = sbr.rel (0) target = $region25
    $region24: #{tpu_custom_call.1} parent=1 // pred_region
      _
    $region25: #{tpu_custom_call.1} parent=1 // pred_fallthru
      _
    // Predicated region
    $region26: #{tpu_custom_call.1} parent=1 // pred_check
      _
    $region27: #{tpu_custom_call.1} parent=1 // pred_check_branch
      %37 = sbr.rel (0) target = $region29
    $region28: #{tpu_custom_call.1} parent=1 // pred_region
      _
    $region29: #{tpu_custom_call.1} parent=1 // pred_fallthru
      _
    // Predicated region
    $region30: #{tpu_custom_call.1} parent=1 // pred_check
      _
    $region31: #{tpu_custom_call.1} parent=1 // pred_check_branch
      %39 = sbr.rel (0) target = $region33
    $region32: #{tpu_custom_call.1} parent=1 // pred_region
      _
    $region33: #{tpu_custom_call.1} parent=1 // pred_fallthru
      _
    // Predicated region
    $region34: #{tpu_custom_call.1} parent=1 // pred_check
      _
    $region35: #{tpu_custom_call.1} parent=1 // pred_check_branch
      %41 = sbr.rel (0) target = $region37
    $region36: #{tpu_custom_call.1} parent=1 // pred_region
      _
    $region37: #{tpu_custom_call.1} parent=1 // pred_fallthru
      _
    // Predicated region
    $region38: #{tpu_custom_call.1} parent=1 // pred_check
      _
    $region39: #{tpu_custom_call.1} parent=1 // pred_check_branch
      %43 = sbr.rel (0) target = $region41
    $region40: #{tpu_custom_call.1} parent=1 // pred_region
      _
    $region41: #{tpu_custom_call.1} parent=1 // pred_fallthru
      _
    // Predicated region
    $region42: #{tpu_custom_call.1} parent=1 // pred_check
      _
    $region43: #{tpu_custom_call.1} parent=1 // pred_check_branch
      %45 = sbr.rel (0) target = $region45
    $region44: #{tpu_custom_call.1} parent=1 // pred_region
      _
    $region45: #{tpu_custom_call.1} parent=1 // pred_fallthru
      _
    // Predicated region
    $region46: #{tpu_custom_call.1} parent=1 // pred_check
      _
    $region47: #{tpu_custom_call.1} parent=1 // pred_check_branch
      %47 = sbr.rel (0) target = $region49
    $region48: #{tpu_custom_call.1} parent=1 // pred_region
      _
    $region49: #{tpu_custom_call.1} parent=1 // pred_fallthru
      _
    // Predicated region
    $region50: #{tpu_custom_call.1} parent=1 // pred_check
      _
    $region51: #{tpu_custom_call.1} parent=1 // pred_check_branch
      %49 = sbr.rel (0) target = $region53
    $region52: #{tpu_custom_call.1} parent=1 // pred_region
      _
    $region53: #{tpu_custom_call.1} parent=1 // pred_fallthru
      _
    // Predicated region
    $region54: #{tpu_custom_call.1} parent=1 // pred_check
      _
    $region55: #{tpu_custom_call.1} parent=1 // pred_check_branch
      %51 = sbr.rel (0) target = $region57
    $region56: #{tpu_custom_call.1} parent=1 // pred_region
      _
    $region57: #{tpu_custom_call.1} parent=1 // pred_fallthru
      _
    // Predicated region
    $region58: #{tpu_custom_call.1} parent=1 // pred_check
      _
    $region59: #{tpu_custom_call.1} parent=1 // pred_check_branch
      %53 = sbr.rel (0) target = $region61
    $region60: #{tpu_custom_call.1} parent=1 // pred_region
      _
    $region61: #{tpu_custom_call.1} parent=1 // pred_fallthru
      _
    // Predicated region
    $region62: #{tpu_custom_call.1} parent=1 // pred_check
      _
    $region63: #{tpu_custom_call.1} parent=1 // pred_check_branch
      %55 = sbr.rel (0) target = $region65
    $region64: #{tpu_custom_call.1} parent=1 // pred_region
      _
    $region65: #{tpu_custom_call.1} parent=1 // pred_fallthru
      _
    // Predicated region
    $region66: #{tpu_custom_call.1} parent=1 // pred_check
      _
    $region67: #{tpu_custom_call.1} parent=1 // pred_check_branch
      %57 = sbr.rel (0) target = $region69
    $region68: #{tpu_custom_call.1} parent=1 // pred_region
      _
    $region69: #{tpu_custom_call.1} parent=1 // pred_fallthru
      _
    // Predicated region
    $region70: #{tpu_custom_call.1} parent=1 // pred_check
      _
    $region71: #{tpu_custom_call.1} parent=1 // pred_check_branch
      %59 = sbr.rel (0) target = $region73
    $region72: #{tpu_custom_call.1} parent=1 // pred_region
      _
    $region73: #{tpu_custom_call.1} parent=1 // pred_fallthru
      _
    %v62 = vld [vmem:[%s0] sm:$0xf]
    %v63 = vld [vmem:[%s0 + $0x4] sm:$0xf]
    %v64 = vld [vmem:[%s1] sm:$0xf]
    %v65 = vld [vmem:[%s1 + $0x4] sm:$0xf]
    %v66 = vld [vmem:[%s1 + $0x8] sm:$0xf]
    %v67 = vld [vmem:[%s1 + $0xc] sm:$0xf]
    %v68 = vld [vmem:[%s2] sm:$0x1]
    %v70 = vlaneseq
    %v71 = vshrl.u32 %v70, 7
    %v72 = vsub.s32 0, %v71
    %v73 = vrot.slane %v68, %v72
    %v77 = vunpack.c.l.b16 %v62
    %v78 = vunpack.c.l.b16 %v63
    %v79 = vpack.c.b16 %v78, %v77
    %v84 = vunpack.c.l.b16 %v64
    %v85 = vunpack.c.l.b16 %v65
    %v86 = vunpack.c.l.b16 %v66
    %v87 = vunpack.c.l.b16 %v67
    %v88 = vpack.c.b16 %v85, %v84
    %v89 = vpack.c.b16 %v87, %v86
    %vm92 = vcmask 261120
    %v94 = vsel %vm92, %v79, 0
    %96 = vmatprep.subr.bf16.mxu0 0
    %97 = vmatpush1.bf16.msra.mxu0 %v88
    %98 = vmatprep.subr.bf16.mxu0 0
    %99 = vmatpush1.bf16.msra.mxu0 %v89
    %100 = vmatprep.subr.bf16.mxu0 0
    %101 = vmatpush1.bf16.msra.mxu0 0
    %102 = vmatprep.subr.bf16.mxu0 0
    %103 = vmatpush1.bf16.msra.mxu0 0
    %104 = vmatprep.subr.bf16.mxu0 0
    %105 = vmatpush1.bf16.msra.mxu0 0
    %106 = vmatprep.subr.bf16.mxu0 0
    %107 = vmatpush1.bf16.msra.mxu0 0
    %108 = vmatprep.subr.bf16.mxu0 0
    %109 = vmatpush1.bf16.msra.mxu0 0
    %110 = vmatprep.subr.bf16.mxu0 0
    %111 = vmatpush1.bf16.msra.mxu0 0
    %112 = vmatprep.subr.bf16.mxu0 0
    %113 = vmatpush1.bf16.msra.mxu0 0
    %114 = vmatprep.subr.bf16.mxu0 0
    %115 = vmatpush1.bf16.msra.mxu0 0
    %116 = vmatprep.subr.bf16.mxu0 0
    %117 = vmatpush1.bf16.msra.mxu0 0
    %118 = vmatprep.subr.bf16.mxu0 0
    %119 = vmatpush1.bf16.msra.mxu0 0
    %120 = vmatprep.subr.bf16.mxu0 0
    %121 = vmatpush1.bf16.msra.mxu0 0
    %122 = vmatprep.subr.bf16.mxu0 0
    %123 = vmatpush1.bf16.msra.mxu0 0
    %124 = vmatprep.subr.bf16.mxu0 0
    %125 = vmatpush1.bf16.msra.mxu0 0
    %126 = vmatprep.subr.bf16.mxu0 0
    %127 = vmatpush1.bf16.msra.mxu0 0
    %128 = vmatprep.mubr.bf16.mxu0 0
    %129 = vmatmul.mubr.bf16.gmra.mrb[0].mxu0 %v94
    %v130 = vpop.f32.mrb[0].mxu0
    %v131 = vadd.f32 %v73, %v130
    %v132 = vpop.f32.mrb[0].mxu0
    %v133 = vpop.f32.mrb[0].mxu0
    %v134 = vadd.f32 %v73, %v133
    %v135 = vpop.f32.mrb[0].mxu0
    %136 = vdwg.mxu0
    %v137 = vpack.c.bf16 %v134, %v131
    %vm138 = vcmp.gt.bf16.partialorder %v137, 0
    %v139 = vmul.bf16 %v137, 1009007652
    %v140 = vsel %vm138, %v137, %v139
    %v141 = vld [vmem:[%s3] sm:$0xf]
    %v142 = vld [vmem:[%s3 + $0x4] sm:$0xf]
    %v143 = vld [vmem:[%s3 + $0x8] sm:$0xf]
    %v144 = vld [vmem:[%s3 + $0xc] sm:$0xf]
    %v145 = vld [vmem:[%s4] sm:$0x1]
    %v147 = vlaneseq
    %v148 = vshrl.u32 %v147, 7
    %v149 = vsub.s32 0, %v148
    %v150 = vrot.slane %v145, %v149
    %v156 = vunpack.c.l.b16 %v141
    %v157 = vunpack.c.l.b16 %v142
    %v158 = vunpack.c.l.b16 %v143
    %v159 = vunpack.c.l.b16 %v144
    %v160 = vpack.c.b16 %v157, %v156
    %v161 = vpack.c.b16 %v159, %v158
    %v165 = vsel %vm92, %v140, 0
    %167 = vmatprep.subr.bf16.mxu0 0
    %168 = vmatpush1.bf16.msra.mxu0 %v160
    %169 = vmatprep.subr.bf16.mxu0 0
    %170 = vmatpush1.bf16.msra.mxu0 %v161
    %171 = vmatprep.subr.bf16.mxu0 0
    %172 = vmatpush1.bf16.msra.mxu0 0
    %173 = vmatprep.subr.bf16.mxu0 0
    %174 = vmatpush1.bf16.msra.mxu0 0
    %175 = vmatprep.subr.bf16.mxu0 0
    %176 = vmatpush1.bf16.msra.mxu0 0
    %177 = vmatprep.subr.bf16.mxu0 0
    %178 = vmatpush1.bf16.msra.mxu0 0
    %179 = vmatprep.subr.bf16.mxu0 0
    %180 = vmatpush1.bf16.msra.mxu0 0
    %181 = vmatprep.subr.bf16.mxu0 0
    %182 = vmatpush1.bf16.msra.mxu0 0
    %183 = vmatprep.subr.bf16.mxu0 0
    %184 = vmatpush1.bf16.msra.mxu0 0
    %185 = vmatprep.subr.bf16.mxu0 0
    %186 = vmatpush1.bf16.msra.mxu0 0
    %187 = vmatprep.subr.bf16.mxu0 0
    %188 = vmatpush1.bf16.msra.mxu0 0
    %189 = vmatprep.subr.bf16.mxu0 0
    %190 = vmatpush1.bf16.msra.mxu0 0
    %191 = vmatprep.subr.bf16.mxu0 0
    %192 = vmatpush1.bf16.msra.mxu0 0
    %193 = vmatprep.subr.bf16.mxu0 0
    %194 = vmatpush1.bf16.msra.mxu0 0
    %195 = vmatprep.subr.bf16.mxu0 0
    %196 = vmatpush1.bf16.msra.mxu0 0
    %197 = vmatprep.subr.bf16.mxu0 0
    %198 = vmatpush1.bf16.msra.mxu0 0
    %199 = vmatprep.mubr.bf16.mxu0 0
    %200 = vmatmul.mubr.bf16.gmra.mrb[0].mxu0 %v165
    %v201 = vpop.f32.mrb[0].mxu0
    %v202 = vadd.f32 %v150, %v201
    %v203 = vpop.f32.mrb[0].mxu0
    %v204 = vpop.f32.mrb[0].mxu0
    %v205 = vadd.f32 %v150, %v204
    %v206 = vpop.f32.mrb[0].mxu0
    %207 = vdwg.mxu0
    %v208 = vpack.c.bf16 %v205, %v202
    %v209 = vld [vmem:[%s5] sm:$0xff]
    %v210 = vld [vmem:[%s5 + $0x8] sm:$0xff]
    %v211 = vld [vmem:[%s5 + $0x10] sm:$0xff]
    %v212 = vld [vmem:[%s5 + $0x18] sm:$0xff]
    %v213 = vld [vmem:[%s6] sm:$0x3]
    %v215 = vlaneseq
    %v216 = vshrl.u32 %v215, 7
    %v217 = vsub.s32 0, %v216
    %v218 = vrot.slane %v213, %v217
    %v219 = vlaneseq
    %v220 = vshrl.u32 %v219, 7
    %v221 = vsub.s32 1, %v220
    %v222 = vrot.slane %v213, %v221
    %v229 = vunpack.c.l.b16 %v209
    %v230 = vunpack.c.h.b16 %v209
    %v231 = vunpack.c.l.b16 %v210
    %v232 = vunpack.c.h.b16 %v210
    %v233 = vunpack.c.l.b16 %v211
    %v234 = vunpack.c.h.b16 %v211
    %v235 = vunpack.c.l.b16 %v212
    %v236 = vunpack.c.h.b16 %v212
    %v237 = vpack.c.b16 %v231, %v229
    %v238 = vpack.c.b16 %v232, %v230
    %v239 = vpack.c.b16 %v235, %v233
    %v240 = vpack.c.b16 %v236, %v234
    %v246 = vsel %vm92, %v208, 0
    %248 = vmatprep.subr.bf16.mxu0 %v238
    %249 = vmatpush1.bf16.msra.mxu0 %v237
    %250 = vmatprep.subr.bf16.mxu0 %v240
    %251 = vmatpush1.bf16.msra.mxu0 %v239
    %252 = vmatprep.subr.bf16.mxu0 0
    %253 = vmatpush1.bf16.msra.mxu0 0
    %254 = vmatprep.subr.bf16.mxu0 0
    %255 = vmatpush1.bf16.msra.mxu0 0
    %256 = vmatprep.subr.bf16.mxu0 0
    %257 = vmatpush1.bf16.msra.mxu0 0
    %258 = vmatprep.subr.bf16.mxu0 0
    %259 = vmatpush1.bf16.msra.mxu0 0
    %260 = vmatprep.subr.bf16.mxu0 0
    %261 = vmatpush1.bf16.msra.mxu0 0
    %262 = vmatprep.subr.bf16.mxu0 0
    %263 = vmatpush1.bf16.msra.mxu0 0
    %264 = vmatprep.subr.bf16.mxu0 0
    %265 = vmatpush1.bf16.msra.mxu0 0
    %266 = vmatprep.subr.bf16.mxu0 0
    %267 = vmatpush1.bf16.msra.mxu0 0
    %268 = vmatprep.subr.bf16.mxu0 0
    %269 = vmatpush1.bf16.msra.mxu0 0
    %270 = vmatprep.subr.bf16.mxu0 0
    %271 = vmatpush1.bf16.msra.mxu0 0
    %272 = vmatprep.subr.bf16.mxu0 0
    %273 = vmatpush1.bf16.msra.mxu0 0
    %274 = vmatprep.subr.bf16.mxu0 0
    %275 = vmatpush1.bf16.msra.mxu0 0
    %276 = vmatprep.subr.bf16.mxu0 0
    %277 = vmatpush1.bf16.msra.mxu0 0
    %278 = vmatprep.subr.bf16.mxu0 0
    %279 = vmatpush1.bf16.msra.mxu0 0
    %280 = vmatprep.mubr.bf16.mxu0 0
    %281 = vmatmul.mubr.bf16.gmra.mrb[0].mxu0 %v246
    %v282 = vpop.f32.mrb[0].mxu0
    %v283 = vadd.f32 %v218, %v282
    %v284 = vpop.f32.mrb[0].mxu0
    %v285 = vadd.f32 %v222, %v284
    %v286 = vpop.f32.mrb[0].mxu0
    %v287 = vadd.f32 %v218, %v286
    %v288 = vpop.f32.mrb[0].mxu0
    %v289 = vadd.f32 %v222, %v288
    %290 = vdwg.mxu0
    %v291 = vpack.c.bf16 %v287, %v283
    %v292 = vpack.c.bf16 %v289, %v285
    %v293 = vmax.bf16 %v291, 0
    %v294 = vld [vmem:[%s7] sm:$0xf]
    %v295 = vld [vmem:[%s7 + $0x4] sm:$0xf]
    %v296 = vld [vmem:[%s7 + $0x8] sm:$0xf]
    %v297 = vld [vmem:[%s7 + $0xc] sm:$0xf]
    %v298 = vld [vmem:[%s7 + $0x10] sm:$0xf]
    %v299 = vld [vmem:[%s7 + $0x14] sm:$0xf]
    %v300 = vld [vmem:[%s7 + $0x18] sm:$0xf]
    %v301 = vld [vmem:[%s7 + $0x1c] sm:$0xf]
    %v302 = vld [vmem:[%s7 + $0x20] sm:$0xf]
    %v303 = vld [vmem:[%s7 + $0x24] sm:$0xf]
    %v304 = vld [vmem:[%s7 + $0x28] sm:$0xf]
    %v305 = vld [vmem:[%s7 + $0x2c] sm:$0xf]
    %v306 = vld [vmem:[%s7 + $0x30] sm:$0xf]
    %v307 = vld [vmem:[%s7 + $0x34] sm:$0xf]
    %v308 = vld [vmem:[%s7 + $0x38] sm:$0xf]
    %v309 = vld [vmem:[%s7 + $0x3c] sm:$0xf]
    %v310 = vld [vmem:[%s8] sm:$0x1]
    %v312 = vlaneseq
    %v313 = vshrl.u32 %v312, 7
    %v314 = vsub.s32 0, %v313
    %v315 = vrot.slane %v310, %v314
    %v333 = vunpack.c.l.b16 %v294
    %v334 = vunpack.c.l.b16 %v295
    %v335 = vunpack.c.l.b16 %v296
    %v336 = vunpack.c.l.b16 %v297
    %v337 = vunpack.c.l.b16 %v298
    %v338 = vunpack.c.l.b16 %v299
    %v339 = vunpack.c.l.b16 %v300
    %v340 = vunpack.c.l.b16 %v301
    %v341 = vunpack.c.l.b16 %v302
    %v342 = vunpack.c.l.b16 %v303
    %v343 = vunpack.c.l.b16 %v304
    %v344 = vunpack.c.l.b16 %v305
    %v345 = vunpack.c.l.b16 %v306
    %v346 = vunpack.c.l.b16 %v307
    %v347 = vunpack.c.l.b16 %v308
    %v348 = vunpack.c.l.b16 %v309
    %v349 = vpack.c.b16 %v334, %v333
    %v350 = vpack.c.b16 %v336, %v335
    %v351 = vpack.c.b16 %v338, %v337
    %v352 = vpack.c.b16 %v340, %v339
    %v353 = vpack.c.b16 %v342, %v341
    %v354 = vpack.c.b16 %v344, %v343
    %v355 = vpack.c.b16 %v346, %v345
    %v356 = vpack.c.b16 %v348, %v347
    %365 = vmatprep.subr.bf16.mxu0 0
    %366 = vmatpush1.bf16.msra.mxu0 %v349
    %367 = vmatprep.subr.bf16.mxu0 0
    %368 = vmatpush1.bf16.msra.mxu0 %v350
    %369 = vmatprep.subr.bf16.mxu0 0
    %370 = vmatpush1.bf16.msra.mxu0 %v351
    %371 = vmatprep.subr.bf16.mxu0 0
    %372 = vmatpush1.bf16.msra.mxu0 %v352
    %373 = vmatprep.subr.bf16.mxu0 0
    %374 = vmatpush1.bf16.msra.mxu0 %v353
    %375 = vmatprep.subr.bf16.mxu0 0
    %376 = vmatpush1.bf16.msra.mxu0 %v354
    %377 = vmatprep.subr.bf16.mxu0 0
    %378 = vmatpush1.bf16.msra.mxu0 %v355
    %379 = vmatprep.subr.bf16.mxu0 0
    %380 = vmatpush1.bf16.msra.mxu0 %v356
    %381 = vmatprep.subr.bf16.mxu0 0
    %382 = vmatpush1.bf16.msra.mxu0 0
    %383 = vmatprep.subr.bf16.mxu0 0
    %384 = vmatpush1.bf16.msra.mxu0 0
    %385 = vmatprep.subr.bf16.mxu0 0
    %386 = vmatpush1.bf16.msra.mxu0 0
    %387 = vmatprep.subr.bf16.mxu0 0
    %388 = vmatpush1.bf16.msra.mxu0 0
    %389 = vmatprep.subr.bf16.mxu0 0
    %390 = vmatpush1.bf16.msra.mxu0 0
    %391 = vmatprep.subr.bf16.mxu0 0
    %392 = vmatpush1.bf16.msra.mxu0 0
    %393 = vmatprep.subr.bf16.mxu0 0
    %394 = vmatpush1.bf16.msra.mxu0 0
    %395 = vmatprep.subr.bf16.mxu0 0
    %396 = vmatpush1.bf16.msra.mxu0 0
    %397 = vmatprep.mubr.bf16.mxu0 0
    %398 = vmatmul.mubr.bf16.gmra.mrb[0].mxu0 %v293
    %v399 = vpop.f32.mrb[0].mxu0
    %v400 = vadd.f32 %v315, %v399
    %v401 = vpop.f32.mrb[0].mxu0
    %v402 = vpop.f32.mrb[0].mxu0
    %v403 = vadd.f32 %v315, %v402
    %v404 = vpop.f32.mrb[0].mxu0
    %405 = vdwg.mxu0
    %v406 = vpack.c.bf16 %v403, %v400
    %v407 = vmax.bf16 %v406, 0
    %v408 = vld [vmem:[%s9] sm:$0xf]
    %v409 = vld [vmem:[%s9 + $0x4] sm:$0xf]
    %v410 = vld [vmem:[%s9 + $0x8] sm:$0xf]
    %v411 = vld [vmem:[%s9 + $0xc] sm:$0xf]
    %v412 = vld [vmem:[%s10] sm:$0x1]
    %v414 = vlaneseq
    %v415 = vshrl.u32 %v414, 7
    %v416 = vsub.s32 0, %v415
    %v417 = vrot.slane %v412, %v416
    %v423 = vunpack.c.l.b16 %v408
    %v424 = vunpack.c.l.b16 %v409
    %v425 = vunpack.c.l.b16 %v410
    %v426 = vunpack.c.l.b16 %v411
    %v427 = vpack.c.b16 %v424, %v423
    %v428 = vpack.c.b16 %v426, %v425
    %v432 = vsel %vm92, %v407, 0
    %434 = vmatprep.subr.bf16.mxu0 0
    %435 = vmatpush1.bf16.msra.mxu0 %v427
    %436 = vmatprep.subr.bf16.mxu0 0
    %437 = vmatpush1.bf16.msra.mxu0 %v428
    %438 = vmatprep.subr.bf16.mxu0 0
    %439 = vmatpush1.bf16.msra.mxu0 0
    %440 = vmatprep.subr.bf16.mxu0 0
    %441 = vmatpush1.bf16.msra.mxu0 0
    %442 = vmatprep.subr.bf16.mxu0 0
    %443 = vmatpush1.bf16.msra.mxu0 0
    %444 = vmatprep.subr.bf16.mxu0 0
    %445 = vmatpush1.bf16.msra.mxu0 0
    %446 = vmatprep.subr.bf16.mxu0 0
    %447 = vmatpush1.bf16.msra.mxu0 0
    %448 = vmatprep.subr.bf16.mxu0 0
    %449 = vmatpush1.bf16.msra.mxu0 0
    %450 = vmatprep.subr.bf16.mxu0 0
    %451 = vmatpush1.bf16.msra.mxu0 0
    %452 = vmatprep.subr.bf16.mxu0 0
    %453 = vmatpush1.bf16.msra.mxu0 0
    %454 = vmatprep.subr.bf16.mxu0 0
    %455 = vmatpush1.bf16.msra.mxu0 0
    %456 = vmatprep.subr.bf16.mxu0 0
    %457 = vmatpush1.bf16.msra.mxu0 0
    %458 = vmatprep.subr.bf16.mxu0 0
    %459 = vmatpush1.bf16.msra.mxu0 0
    %460 = vmatprep.subr.bf16.mxu0 0
    %461 = vmatpush1.bf16.msra.mxu0 0
    %462 = vmatprep.subr.bf16.mxu0 0
    %463 = vmatpush1.bf16.msra.mxu0 0
    %464 = vmatprep.subr.bf16.mxu0 0
    %465 = vmatpush1.bf16.msra.mxu0 0
    %466 = vmatprep.mubr.bf16.mxu0 0
    %467 = vmatmul.mubr.bf16.gmra.mrb[0].mxu0 %v432
    %v468 = vpop.f32.mrb[0].mxu0
    %v469 = vadd.f32 %v417, %v468
    %v470 = vpop.f32.mrb[0].mxu0
    %v471 = vpop.f32.mrb[0].mxu0
    %v472 = vadd.f32 %v417, %v471
    %v473 = vpop.f32.mrb[0].mxu0
    %474 = vdwg.mxu0
    %v475 = vpack.c.bf16 %v472, %v469
    %v476 = vmax.bf16 %v475, 0
    %v477 = vadd.bf16 %v476, %v292
    %v478 = vld [vmem:[%s11] sm:$0xff]
    %v479 = vld [vmem:[%s11 + $0x8] sm:$0xff]
    %v480 = vld [vmem:[%s11 + $0x10] sm:$0xff]
    %v481 = vld [vmem:[%s11 + $0x18] sm:$0xff]
    %v482 = vld [vmem:[%s12] sm:$0x3]
    %v484 = vlaneseq
    %v485 = vshrl.u32 %v484, 7
    %v486 = vsub.s32 0, %v485
    %v487 = vrot.slane %v482, %v486
    %v488 = vlaneseq
    %v489 = vshrl.u32 %v488, 7
    %v490 = vsub.s32 1, %v489
    %v491 = vrot.slane %v482, %v490
    %v498 = vunpack.c.l.b16 %v478
    %v499 = vunpack.c.h.b16 %v478
    %v500 = vunpack.c.l.b16 %v479
    %v501 = vunpack.c.h.b16 %v479
    %v502 = vunpack.c.l.b16 %v480
    %v503 = vunpack.c.h.b16 %v480
    %v504 = vunpack.c.l.b16 %v481
    %v505 = vunpack.c.h.b16 %v481
    %v506 = vpack.c.b16 %v500, %v498
    %v507 = vpack.c.b16 %v501, %v499
    %v508 = vpack.c.b16 %v504, %v502
    %v509 = vpack.c.b16 %v505, %v503
    %v515 = vsel %vm92, %v477, 0
    %517 = vmatprep.subr.bf16.mxu0 %v507
    %518 = vmatpush1.bf16.msra.mxu0 %v506
    %519 = vmatprep.subr.bf16.mxu0 %v509
    %520 = vmatpush1.bf16.msra.mxu0 %v508
    %521 = vmatprep.subr.bf16.mxu0 0
    %522 = vmatpush1.bf16.msra.mxu0 0
    %523 = vmatprep.subr.bf16.mxu0 0
    %524 = vmatpush1.bf16.msra.mxu0 0
    %525 = vmatprep.subr.bf16.mxu0 0
    %526 = vmatpush1.bf16.msra.mxu0 0
    %527 = vmatprep.subr.bf16.mxu0 0
    %528 = vmatpush1.bf16.msra.mxu0 0
    %529 = vmatprep.subr.bf16.mxu0 0
    %530 = vmatpush1.bf16.msra.mxu0 0
    %531 = vmatprep.subr.bf16.mxu0 0
    %532 = vmatpush1.bf16.msra.mxu0 0
    %533 = vmatprep.subr.bf16.mxu0 0
    %534 = vmatpush1.bf16.msra.mxu0 0
    %535 = vmatprep.subr.bf16.mxu0 0
    %536 = vmatpush1.bf16.msra.mxu0 0
    %537 = vmatprep.subr.bf16.mxu0 0
    %538 = vmatpush1.bf16.msra.mxu0 0
    %539 = vmatprep.subr.bf16.mxu0 0
    %540 = vmatpush1.bf16.msra.mxu0 0
    %541 = vmatprep.subr.bf16.mxu0 0
    %542 = vmatpush1.bf16.msra.mxu0 0
    %543 = vmatprep.subr.bf16.mxu0 0
    %544 = vmatpush1.bf16.msra.mxu0 0
    %545 = vmatprep.subr.bf16.mxu0 0
    %546 = vmatpush1.bf16.msra.mxu0 0
    %547 = vmatprep.subr.bf16.mxu0 0
    %548 = vmatpush1.bf16.msra.mxu0 0
    %549 = vmatprep.mubr.bf16.mxu0 0
    %550 = vmatmul.mubr.bf16.gmra.mrb[0].mxu0 %v515
    %v551 = vpop.f32.mrb[0].mxu0
    %v552 = vadd.f32 %v487, %v551
    %v553 = vpop.f32.mrb[0].mxu0
    %v554 = vadd.f32 %v491, %v553
    %v555 = vpop.f32.mrb[0].mxu0
    %v556 = vadd.f32 %v487, %v555
    %v557 = vpop.f32.mrb[0].mxu0
    %v558 = vadd.f32 %v491, %v557
    %559 = vdwg.mxu0
    %v560 = vpack.c.bf16 %v556, %v552
    %v561 = vpack.c.bf16 %v558, %v554
    %vm562 = vcmp.gt.bf16.partialorder %v560, 0
    %v563 = vmul.bf16 %v560, 1009007652
    %v564 = vsel %vm562, %v560, %v563
    %v565 = vld [vmem:[%s13] sm:$0xf]
    %v566 = vld [vmem:[%s13 + $0x4] sm:$0xf]
    %v567 = vld [vmem:[%s13 + $0x8] sm:$0xf]
    %v568 = vld [vmem:[%s13 + $0xc] sm:$0xf]
    %v569 = vld [vmem:[%s13 + $0x10] sm:$0xf]
    %v570 = vld [vmem:[%s13 + $0x14] sm:$0xf]
    %v571 = vld [vmem:[%s13 + $0x18] sm:$0xf]
    %v572 = vld [vmem:[%s13 + $0x1c] sm:$0xf]
    %v573 = vld [vmem:[%s13 + $0x20] sm:$0xf]
    %v574 = vld [vmem:[%s13 + $0x24] sm:$0xf]
    %v575 = vld [vmem:[%s13 + $0x28] sm:$0xf]
    %v576 = vld [vmem:[%s13 + $0x2c] sm:$0xf]
    %v577 = vld [vmem:[%s13 + $0x30] sm:$0xf]
    %v578 = vld [vmem:[%s13 + $0x34] sm:$0xf]
    %v579 = vld [vmem:[%s13 + $0x38] sm:$0xf]
    %v580 = vld [vmem:[%s13 + $0x3c] sm:$0xf]
    %v581 = vld [vmem:[%s14] sm:$0x1]
    %v583 = vlaneseq
    %v584 = vshrl.u32 %v583, 7
    %v585 = vsub.s32 0, %v584
    %v586 = vrot.slane %v581, %v585
    %v604 = vunpack.c.l.b16 %v565
    %v605 = vunpack.c.l.b16 %v566
    %v606 = vunpack.c.l.b16 %v567
    %v607 = vunpack.c.l.b16 %v568
    %v608 = vunpack.c.l.b16 %v569
    %v609 = vunpack.c.l.b16 %v570
    %v610 = vunpack.c.l.b16 %v571
    %v611 = vunpack.c.l.b16 %v572
    %v612 = vunpack.c.l.b16 %v573
    %v613 = vunpack.c.l.b16 %v574
    %v614 = vunpack.c.l.b16 %v575
    %v615 = vunpack.c.l.b16 %v576
    %v616 = vunpack.c.l.b16 %v577
    %v617 = vunpack.c.l.b16 %v578
    %v618 = vunpack.c.l.b16 %v579
    %v619 = vunpack.c.l.b16 %v580
    %v620 = vpack.c.b16 %v605, %v604
    %v621 = vpack.c.b16 %v607, %v606
    %v622 = vpack.c.b16 %v609, %v608
    %v623 = vpack.c.b16 %v611, %v610
    %v624 = vpack.c.b16 %v613, %v612
    %v625 = vpack.c.b16 %v615, %v614
    %v626 = vpack.c.b16 %v617, %v616
    %v627 = vpack.c.b16 %v619, %v618
    %636 = vmatprep.subr.bf16.mxu0 0
    %637 = vmatpush1.bf16.msra.mxu0 %v620
    %638 = vmatprep.subr.bf16.mxu0 0
    %639 = vmatpush1.bf16.msra.mxu0 %v621
    %640 = vmatprep.subr.bf16.mxu0 0
    %641 = vmatpush1.bf16.msra.mxu0 %v622
    %642 = vmatprep.subr.bf16.mxu0 0
    %643 = vmatpush1.bf16.msra.mxu0 %v623
    %644 = vmatprep.subr.bf16.mxu0 0
    %645 = vmatpush1.bf16.msra.mxu0 %v624
    %646 = vmatprep.subr.bf16.mxu0 0
    %647 = vmatpush1.bf16.msra.mxu0 %v625
    %648 = vmatprep.subr.bf16.mxu0 0
    %649 = vmatpush1.bf16.msra.mxu0 %v626
    %650 = vmatprep.subr.bf16.mxu0 0
    %651 = vmatpush1.bf16.msra.mxu0 %v627
    %652 = vmatprep.subr.bf16.mxu0 0
    %653 = vmatpush1.bf16.msra.mxu0 0
    %654 = vmatprep.subr.bf16.mxu0 0
    %655 = vmatpush1.bf16.msra.mxu0 0
    %656 = vmatprep.subr.bf16.mxu0 0
    %657 = vmatpush1.bf16.msra.mxu0 0
    %658 = vmatprep.subr.bf16.mxu0 0
    %659 = vmatpush1.bf16.msra.mxu0 0
    %660 = vmatprep.subr.bf16.mxu0 0
    %661 = vmatpush1.bf16.msra.mxu0 0
    %662 = vmatprep.subr.bf16.mxu0 0
    %663 = vmatpush1.bf16.msra.mxu0 0
    %664 = vmatprep.subr.bf16.mxu0 0
    %665 = vmatpush1.bf16.msra.mxu0 0
    %666 = vmatprep.subr.bf16.mxu0 0
    %667 = vmatpush1.bf16.msra.mxu0 0
    %668 = vmatprep.mubr.bf16.mxu0 0
    %669 = vmatmul.mubr.bf16.gmra.mrb[0].mxu0 %v564
    %v670 = vpop.f32.mrb[0].mxu0
    %v671 = vadd.f32 %v586, %v670
    %v672 = vpop.f32.mrb[0].mxu0
    %v673 = vpop.f32.mrb[0].mxu0
    %v674 = vadd.f32 %v586, %v673
    %v675 = vpop.f32.mrb[0].mxu0
    %676 = vdwg.mxu0
    %v677 = vpack.c.bf16 %v674, %v671
    %vm678 = vcmp.gt.bf16.partialorder %v677, 0
    %v679 = vmul.bf16 %v677, 1009007652
    %v680 = vsel %vm678, %v677, %v679
    %v681 = vadd.bf16 %v680, %v561
    %v682 = vld [vmem:[%s15] sm:$0xff]
    %v683 = vld [vmem:[%s15 + $0x8] sm:$0x33]
    %v686 = vunpack.c.l.b16 %v682
    %v687 = vunpack.c.h.b16 %v682
    %v688 = vunpack.c.l.b16 %v683
    %v689 = vunpack.c.h.b16 %v683
    %v690 = vpack.c.b16 %v688, %v686
    %v691 = vpack.c.b16 %v689, %v687
    %vm692 = vcmask 97280
    %v694 = vsel %vm692, %v681, 0
    %vm696 = vcmask 1045504
    %v698 = vsel %vm696, %v690, 0
    %v701 = vsel %vm696, %v691, 0
    %703 = vmatprep.subr.bf16.mxu0 %v701
    %704 = vmatpush1.bf16.msra.mxu0 %v698
    %705 = vmatprep.subr.bf16.mxu0 0
    %706 = vmatpush1.bf16.msra.mxu0 0
    %707 = vmatprep.subr.bf16.mxu0 0
    %708 = vmatpush1.bf16.msra.mxu0 0
    %709 = vmatprep.subr.bf16.mxu0 0
    %710 = vmatpush1.bf16.msra.mxu0 0
    %711 = vmatprep.subr.bf16.mxu0 0
    %712 = vmatpush1.bf16.msra.mxu0 0
    %713 = vmatprep.subr.bf16.mxu0 0
    %714 = vmatpush1.bf16.msra.mxu0 0
    %715 = vmatprep.subr.bf16.mxu0 0
    %716 = vmatpush1.bf16.msra.mxu0 0
    %717 = vmatprep.subr.bf16.mxu0 0
    %718 = vmatpush1.bf16.msra.mxu0 0
    %719 = vmatprep.subr.bf16.mxu0 0
    %720 = vmatpush1.bf16.msra.mxu0 0
    %721 = vmatprep.subr.bf16.mxu0 0
    %722 = vmatpush1.bf16.msra.mxu0 0
    %723 = vmatprep.subr.bf16.mxu0 0
    %724 = vmatpush1.bf16.msra.mxu0 0
    %725 = vmatprep.subr.bf16.mxu0 0
    %726 = vmatpush1.bf16.msra.mxu0 0
    %727 = vmatprep.subr.bf16.mxu0 0
    %728 = vmatpush1.bf16.msra.mxu0 0
    %729 = vmatprep.subr.bf16.mxu0 0
    %730 = vmatpush1.bf16.msra.mxu0 0
    %731 = vmatprep.subr.bf16.mxu0 0
    %732 = vmatpush1.bf16.msra.mxu0 0
    %733 = vmatprep.subr.bf16.mxu0 0
    %734 = vmatpush1.bf16.msra.mxu0 0
    %735 = vmatprep.mubr.bf16.mxu0 0
    %736 = vmatmul.mubr.bf16.gmra.mrb[0].mxu0 %v694
    %v737 = vpop.f32.mrb[0].mxu0
    %v738 = vadd.f32 0.0, %v737
    %v739 = vpop.f32.mrb[0].mxu0
    %v740 = vadd.f32 0.0, %v739
    %v741 = vpop.f32.mrb[0].mxu0
    %v742 = vadd.f32 0.0, %v741
    %v743 = vpop.f32.mrb[0].mxu0
    %v744 = vadd.f32 0.0, %v743
    %745 = vdwg.mxu0
    %v746 = vunpack.c.l.bf16 %v681
    %v747 = vunpack.c.h.bf16 %v681
    %v748 = vmul.f32 %v746, %v746
    %v749 = vmul.f32 %v747, %v747
    %v750 = vsel %vm692, %v748, 0.0
    %751 = vadd.xlane.f32.xlu0 %v750
    %v752 = vpop.xlane.xlu0 %751
    %v753 = vsel %vm692, %v749, 0.0
    %754 = vadd.xlane.f32.xlu0 %v753
    %v755 = vpop.xlane.xlu0 %754
    %v756 = vmul.f32 %v738, 2.0
    %v757 = vmul.f32 %v742, 2.0
    %v758 = vsub.f32 %v752, %v756
    %v759 = vsub.f32 %v755, %v757
    %v760 = vld [vmem:[%s16] sm:$0x1]
    %v762 = vlaneseq
    %v763 = vshrl.u32 %v762, 7
    %v764 = vsub.s32 0, %v763
    %v765 = vrot.slane %v760, %v764
    %v767 = vadd.f32 %v758, %v765
    %v768 = vadd.f32 %v759, %v765
    %v769 = vmax.f32 %v767, 0.0
    %v770 = vmax.f32 %v768, 0.0
    %v771 = vadd.f32 %v769, 1.0
    %v772 = vadd.f32 %v770, 1.0
    %v773 = vrcp.pop %v771
    %v774 = vmul.f32 1.0, %v773
    %v775 = vrcp.pop %v772
    %v776 = vmul.f32 1.0, %v775
    %vm777 = vcmask 23552
    %v778 = vsel %vm777, %v774, 0.0
    %779 = vadd.xlane.f32.xlu0 %v778
    %v780 = vpop.xlane.xlu0 %779
    %v781 = vsel %vm777, %v776, 0.0
    %782 = vadd.xlane.f32.xlu0 %v781
    %v783 = vpop.xlane.xlu0 %782
    %v784 = vrcp.pop %v780
    %v785 = vmul.f32 %v774, %v784
    %v786 = vrcp.pop %v783
    %v787 = vmul.f32 %v776, %v786
    %v788 = vmul.f32 %v740, %v740
    %v789 = vmul.f32 %v744, %v744
    %v790 = vld [vmem:[%s17] sm:$0xf]
    %v791 = vld [vmem:[%s17 + $0x4] sm:$0x3]
    %v792 = vpack.c.bf16 %v789, %v788
    %v795 = vunpack.c.l.b16 %v790
    %v796 = vunpack.c.l.b16 %v791
    %v797 = vpack.c.b16 %v796, %v795
    %v799 = vsel %vm692, %v792, 0
    %v802 = vsel %vm696, %v797, 0
    %804 = vmatprep.subr.bf16.mxu0 0
    %805 = vmatpush1.bf16.msra.mxu0 %v802
    %806 = vmatprep.subr.bf16.mxu0 0
    %807 = vmatpush1.bf16.msra.mxu0 0
    %808 = vmatprep.subr.bf16.mxu0 0
    %809 = vmatpush1.bf16.msra.mxu0 0
    %810 = vmatprep.subr.bf16.mxu0 0
    %811 = vmatpush1.bf16.msra.mxu0 0
    %812 = vmatprep.subr.bf16.mxu0 0
    %813 = vmatpush1.bf16.msra.mxu0 0
    %814 = vmatprep.subr.bf16.mxu0 0
    %815 = vmatpush1.bf16.msra.mxu0 0
    %816 = vmatprep.subr.bf16.mxu0 0
    %817 = vmatpush1.bf16.msra.mxu0 0
    %818 = vmatprep.subr.bf16.mxu0 0
    %819 = vmatpush1.bf16.msra.mxu0 0
    %820 = vmatprep.subr.bf16.mxu0 0
    %821 = vmatpush1.bf16.msra.mxu0 0
    %822 = vmatprep.subr.bf16.mxu0 0
    %823 = vmatpush1.bf16.msra.mxu0 0
    %824 = vmatprep.subr.bf16.mxu0 0
    %825 = vmatpush1.bf16.msra.mxu0 0
    %826 = vmatprep.subr.bf16.mxu0 0
    %827 = vmatpush1.bf16.msra.mxu0 0
    %828 = vmatprep.subr.bf16.mxu0 0
    %829 = vmatpush1.bf16.msra.mxu0 0
    %830 = vmatprep.subr.bf16.mxu0 0
    %831 = vmatpush1.bf16.msra.mxu0 0
    %832 = vmatprep.subr.bf16.mxu0 0
    %833 = vmatpush1.bf16.msra.mxu0 0
    %834 = vmatprep.subr.bf16.mxu0 0
    %835 = vmatpush1.bf16.msra.mxu0 0
    %836 = vmatprep.mubr.bf16.mxu0 0
    %837 = vmatmul.mubr.bf16.gmra.mrb[0].mxu0 %v799
    %v838 = vpop.f32.mrb[0].mxu0
    %v839 = vadd.f32 4.0, %v838
    %v840 = vpop.f32.mrb[0].mxu0
    %v841 = vpop.f32.mrb[0].mxu0
    %v842 = vadd.f32 4.0, %v841
    %v843 = vpop.f32.mrb[0].mxu0
    %844 = vdwg.mxu0
    %v845 = vmul.f32 %v839, 0.125
    %v846 = vmul.f32 %v842, 0.125
    %v847 = vsel %vm777, %v845, 0.0
    %848 = vadd.xlane.f32.xlu0 %v847
    %v849 = vpop.xlane.xlu0 %848
    %v850 = vsel %vm777, %v846, 0.0
    %851 = vadd.xlane.f32.xlu0 %v850
    %v852 = vpop.xlane.xlu0 %851
    %v853 = vrcp.pop %v849
    %v854 = vmul.f32 %v845, %v853
    %v855 = vrcp.pop %v852
    %v856 = vmul.f32 %v846, %v855
    %v857 = vunpack.c.l.bf16 %v477
    %v858 = vunpack.c.h.bf16 %v477
    %861 = vrot.lane.b32.xlu0 %v746, 32
    %v862 = vpop.permute.xlu0 %861
    %863 = vrot.lane.b32.xlu0 %v747, 32
    %v864 = vpop.permute.xlu0 %863
    %869 = vrot.lane.b32.xlu0 %v785, 44
    %v870 = vpop.permute.xlu0 %869
    %871 = vrot.lane.b32.xlu0 %v787, 44
    %v872 = vpop.permute.xlu0 %871
    %877 = vrot.lane.b32.xlu0 %v854, 47
    %v878 = vpop.permute.xlu0 %877
    %879 = vrot.lane.b32.xlu0 %v856, 47
    %v880 = vpop.permute.xlu0 %879
    %v883 = vsel %vm92, %v857, %v862
    %v884 = vsel %vm92, %v858, %v864
    %vm885 = vcmask 359424
    %v886 = vsel %vm885, %v883, %v870
    %v887 = vsel %vm885, %v884, %v872
    %vm888 = vcmask 384000
    %v889 = vsel %vm888, %v886, %v878
    %v890 = vsel %vm888, %v887, %v880
    %vm891 = vcmask 408576
    %v892 = vsel %vm891, %v889, 0.0
    %v893 = vsel %vm891, %v890, 0.0
    %894 = vst [vmem:[#allocation2] sm:$0xff] %v892
    %895 = vst [vmem:[#allocation2 + $0x8] sm:$0xff] %v893
    // Predicated region
    $region74: #{tpu_custom_call.1} parent=1 // pred_check
      _
    $region75: #{tpu_custom_call.1} parent=1 // pred_check_branch
      %897 = sbr.rel (0) target = $region77
    $region76: #{tpu_custom_call.1} parent=1 // pred_region
      %s899 = ssub.s32 256, 256
      %900 = vsyncadd [#allocation3], %s899
      %s901 = sshll.u32 [#allocation2], 4
      %s902 = int_to_ptr.vmem [resolvable:$true] %s901
      %907 = dma.vmem_to_hbm [thread:$0]  %s902, 256, %s18, [#allocation3], 128, 128, 8
    $region77: #{tpu_custom_call.1} parent=1 // pred_fallthru
      _
    // Predicated region
    $region78: #{tpu_custom_call.1} parent=1 // pred_check
      _
    $region79: #{tpu_custom_call.1} parent=1 // pred_check_branch
      %909 = sbr.rel (0) target = $region81
    $region80: #{tpu_custom_call.1} parent=1 // pred_region
      %910 = dma.done [#allocation3], 256
    $region81: #{tpu_custom_call.1} parent=1 // pred_fallthru
      _
    %911 = vsyncpa [#allocation3], 1

</llo_original>
